<compile_context>
chip_gen: v7x
topology: tpu7x:2x2x1
jax: 0.10.0
libtpu: 0.0.40
codegen_flags: <defaults>
</compile_context>

<pallas_src>
import jax
import jax.numpy as jnp
from jax.experimental import pallas as pl
from jax.experimental.pallas import tpu as pltpu

_LN_EPS = 1e-5


def _layernorm(x, eps=_LN_EPS):
    # nn.LayerNorm(dm, elementwise_affine=False): (x - mean) / sqrt(var + eps)
    mu = jnp.mean(x, axis=-1, keepdims=True)
    xc = x - mu
    var = jnp.mean(xc * xc, axis=-1, keepdims=True)
    return xc * jax.lax.rsqrt(var + eps)


# ----------------------------------------------------------------------------
# Pallas kernel: one Block4 forward for `bb` batch elements per grid step.
# ----------------------------------------------------------------------------
def block4_kernel(x_ref, wv_ref, wo_ref, bo_ref, w1_ref, b1_ref, w2_ref, b2_ref,
                  o_ref):
    f32, bf16 = jnp.float32, jnp.bfloat16
    bb, T, dm = x_ref.shape
    hdv = wv_ref.shape[-1]

    x = x_ref[...].reshape(bb * T, dm)                       # (bb*T, dm) f32

    # ---------------- attention branch: x + W_o(prefix_mean(V)) + b_o --------
    xn = _layernorm(x).astype(bf16)
    v = jnp.dot(xn, wv_ref[...], preferred_element_type=f32)  # (bb*T, h*dv)

    # causal prefix-mean matrix A[t, s] = 1/(t+1) for s <= t else 0
    # (exactly equal to softmax(masked key-constant score); see header note).
    row = jax.lax.broadcasted_iota(jnp.int32, (T, T), 0)
    col = jax.lax.broadcasted_iota(jnp.int32, (T, T), 1)
    A = jnp.where(col <= row, 1.0 / (row.astype(f32) + 1.0), 0.0).astype(bf16)

    v3 = v.reshape(bb, T, hdv).astype(bf16)
    att = jnp.einsum('bts,bsv->btv', jnp.broadcast_to(A, (bb, T, T)), v3,
                     preferred_element_type=f32)              # (bb, T, h*dv)
    att = att.reshape(bb * T, hdv)

    # single output projection: full-K (= h*dv) MXU matmul, no per-head reduce
    proj = jnp.dot(att.astype(bf16), wo_ref[...],
                   preferred_element_type=f32) + bo_ref[0]
    x = x + proj

    # ---------------- feed-forward branch: x + FFN(ln2(x)) -------------------
    # TODO(synk): all nn.Dropout layers are identity (eval mode).
    xn2 = _layernorm(x).astype(bf16)
    hid = jnp.dot(xn2, w1_ref[...], preferred_element_type=f32) + b1_ref[0]
    hid = jnp.maximum(hid, 0.0)                               # ReLU
    y = jnp.dot(hid.astype(bf16), w2_ref[...], preferred_element_type=f32) + b2_ref[0]

    o_ref[...] = (x + y).reshape(bb, T, dm)


# ----------------------------------------------------------------------------
# pallas_call wrapper
# ----------------------------------------------------------------------------
def _pick_batch_block(B, T):
    # target >= ~256 rows per grid step; keep >= 2 grid steps when possible so
    # the "parallel" axis can be split across v7x's two TensorCores.
    target = max(1, pl.cdiv(256, T))
    divs = [d for d in range(1, B + 1) if B % d == 0]
    pref = [d for d in divs if d <= target and B // d >= 2]
    if pref:
        return max(pref)
    ok = [d for d in divs if d <= target]
    return max(ok) if ok else 1


def run_block4(x, p, *, bb=None):
    B, T, dm = x.shape
    hdv = p['w_v'].shape[-1]
    d_ff = p['w1'].shape[-1]
    if bb is None:
        bb = _pick_batch_block(B, T)
    assert B % bb == 0
    grid = (B // bb,)

    operands = (x, p['w_v'], p['w_o'], p['b_o'], p['w1'], p['b1'], p['w2'], p['b2'])

    # VMEM budget: x/out blocks double-buffered, weights single-buffered (x1),
    # plus headroom for intermediates / compiler scratch; cap per generation.
    x_blk = bb * T * dm * 4
    w_bytes = sum(int(a.size) * a.dtype.itemsize for a in operands[1:])
    need = 4 * x_blk + w_bytes + (16 << 20)
    try:
        kind = jax.devices()[0].device_kind.lower()
    except Exception:
        kind = ""
    cap = (100 << 20) if ("v5" in kind or "v6" in kind) else (48 << 20)
    vmem_limit = int(min(max(need, 32 << 20), cap))

    const2 = lambda b: (0, 0)
    # grid-invariant weights: single-buffered (constant index_map -> fetched once)
    wspec = lambda shape: pl.BlockSpec(shape, const2, pipeline_mode=pl.Buffered(1))

    return pl.pallas_call(
        block4_kernel,
        out_shape=jax.ShapeDtypeStruct((B, T, dm), jnp.float32),
        grid=grid,
        in_specs=[
            pl.BlockSpec((bb, T, dm), lambda b: (b, 0, 0)),   # x block
            wspec((dm, hdv)),     # fused W_v (bf16)
            wspec((hdv, dm)),     # W_o       (bf16)
            wspec((1, dm)),       # b_o       (f32)
            wspec((dm, d_ff)),    # W1        (bf16)
            wspec((1, d_ff)),     # b1        (f32)
            wspec((d_ff, dm)),    # W2        (bf16)
            wspec((1, dm)),       # b2        (f32)
        ],
        out_specs=pl.BlockSpec((bb, T, dm), lambda b: (b, 0, 0)),
        compiler_params=pltpu.CompilerParams(
            dimension_semantics=("parallel",),
            vmem_limit_bytes=vmem_limit),
    )(*operands)


# ----------------------------------------------------------------------------
# Parameter init (PyTorch Linear layout: (out_features, in_features)) + packing
# ----------------------------------------------------------------------------
def init_torch_params(key, *, dm, h):
    dk = dv = dm // h
    d_ff = 4 * dm
    keys = iter(jax.random.split(key, 7 * h + 6))

    def nrm(shape, scale=0.05):
        return jax.random.normal(next(keys), shape, jnp.float32) * scale

    heads = [dict(wk=nrm((dk, dm)), wq=nrm((dk, dm)), wv=nrm((dv, dm)),
                  wh=nrm((dk, 2 * dk)), bh=nrm((dk,)),
                  ws=nrm((1, dk)), bs=nrm((1,))) for _ in range(h)]
    return dict(heads=heads,
                wo=nrm((dm, h * dv)), bo=nrm((dm,)),
                w1=nrm((d_ff, dm)), b1=nrm((d_ff,)),
                w2=nrm((dm, d_ff)), b2=nrm((dm,)))


def pack_params(tp):
    heads = tp['heads']
    bf = lambda a: a.astype(jnp.bfloat16)
    # fused V projection: per-head column block = W_v^T (matches torch.cat over heads)
    w_v = jnp.concatenate([hd['wv'].T for hd in heads], axis=1)   # (dm, h*dv)
    # NOTE: W_k/W_q/W_h/b_h/W_s/b_s are not packed -- the score path cancels
    # exactly through the key-constant softmax (see kernel header).
    return dict(w_v=bf(w_v),
                w_o=bf(tp['wo'].T), b_o=tp['bo'][None, :],
                w1=bf(tp['w1'].T), b1=tp['b1'][None, :],
                w2=bf(tp['w2'].T), b2=tp['b2'][None, :])


# ----------------------------------------------------------------------------
# Pure-JAX reference: literal per-head LearnedSimilarityHead forward (with the
# full score path + softmax), mirroring the bf16 matmul casts of the kernel.
# ----------------------------------------------------------------------------
def reference_block4(x, tp):
    bf16 = jnp.bfloat16
    B, T, dm = x.shape

    def mm(a, b):
        return jnp.dot(a.astype(bf16), b.astype(bf16),
                       preferred_element_type=jnp.float32)

    causal = jnp.tril(jnp.ones((T, T), dtype=bool))
    xn = _layernorm(x)
    head_outs = []
    for hd in tp['heads']:
        k = mm(xn, hd['wk'].T)
        q = mm(xn, hd['wq'].T)
        z = jnp.tanh(mm(jnp.concatenate([k, q], axis=-1), hd['wh'].T) + hd['bh'])
        s = mm(z, hd['ws'].T) + hd['bs']                       # (B, T, 1) per-query score
        v = mm(xn, hd['wv'].T)                                 # (B, T, dv)
        wei = jnp.where(causal[None], s, -jnp.inf)             # broadcast -> (B, T, T)
        wei = jax.nn.softmax(wei, axis=-1)
        head_outs.append(jnp.einsum('bts,bsv->btv', wei.astype(bf16), v.astype(bf16),
                                    preferred_element_type=jnp.float32))
    att = jnp.concatenate(head_outs, axis=-1)                  # (B, T, h*dv)
    x = x + mm(att, tp['wo'].T) + tp['bo']
    xn2 = _layernorm(x)
    hid = jnp.maximum(mm(xn2, tp['w1'].T) + tp['b1'], 0.0)
    return x + mm(hid, tp['w2'].T) + tp['b2']


if __name__ == "__main__":
    # small config consistent with the module: dk = dv = dm // h, T <= block_size(256),
    # dm a multiple of 128 so every store is lane-dense.
    B, T, dm, h = 2, 16, 128, 4

    key = jax.random.PRNGKey(0)
    kp, kx = jax.random.split(key)
    torch_params = init_torch_params(kp, dm=dm, h=h)
    packed = pack_params(torch_params)
    x = jax.random.normal(kx, (B, T, dm), jnp.float32)

    out = jax.block_until_ready(jax.jit(run_block4)(x, packed))

    ref = reference_block4(x, torch_params)
    assert out.shape == (B, T, dm)
    max_err = float(jnp.max(jnp.abs(out - ref)))
    assert jnp.allclose(out, ref, atol=5e-3, rtol=5e-3), f"mismatch vs reference: {max_err}"

    print("KERNEL_OK")
</pallas_src>

<mosaic_0001>
module attributes {stable_mosaic.version = 11 : i64} {
  func.func @block4_kernel(%arg0: i32, %arg1: memref<1x16x128xf32, #tpu.memory_space<vmem>>, %arg2: memref<128x128xbf16, #tpu.memory_space<vmem>>, %arg3: memref<128x128xbf16, #tpu.memory_space<vmem>>, %arg4: memref<1x128xf32, #tpu.memory_space<vmem>>, %arg5: memref<128x512xbf16, #tpu.memory_space<vmem>>, %arg6: memref<1x512xf32, #tpu.memory_space<vmem>>, %arg7: memref<512x128xbf16, #tpu.memory_space<vmem>>, %arg8: memref<1x128xf32, #tpu.memory_space<vmem>>, %arg9: memref<1x16x128xf32, #tpu.memory_space<vmem>>) attributes {dimension_semantics = [#tpu.dimension_semantics<parallel>], iteration_bounds = array<i64: 2>, scalar_prefetch = 0 : i64, scratch_operands = 0 : i64, tpu.core_type = #tpu.core_type<tc>, window_params = [{transform_indices = @transform_0, window_bounds = array<i64: 1, 16, 128>}, {pipeline_mode = #tpu.pipeline_mode<synchronous>, transform_indices = @transform_1, window_bounds = array<i64: 128, 128>}, {pipeline_mode = #tpu.pipeline_mode<synchronous>, transform_indices = @transform_2, window_bounds = array<i64: 128, 128>}, {pipeline_mode = #tpu.pipeline_mode<synchronous>, transform_indices = @transform_3, window_bounds = array<i64: 1, 128>}, {pipeline_mode = #tpu.pipeline_mode<synchronous>, transform_indices = @transform_4, window_bounds = array<i64: 128, 512>}, {pipeline_mode = #tpu.pipeline_mode<synchronous>, transform_indices = @transform_5, window_bounds = array<i64: 1, 512>}, {pipeline_mode = #tpu.pipeline_mode<synchronous>, transform_indices = @transform_6, window_bounds = array<i64: 512, 128>}, {pipeline_mode = #tpu.pipeline_mode<synchronous>, transform_indices = @transform_7, window_bounds = array<i64: 1, 128>}, {transform_indices = @transform_8, window_bounds = array<i64: 1, 16, 128>}]} {
    %c0 = arith.constant 0 : index
    %c0_0 = arith.constant 0 : index
    %c0_1 = arith.constant 0 : index
    %0 = vector.load %arg1[%c0, %c0_0, %c0_1] : memref<1x16x128xf32, #tpu.memory_space<vmem>>, vector<1x16x128xf32>
    %1 = vector.shape_cast %0 : vector<1x16x128xf32> to vector<16x128xf32>
    %cst = arith.constant dense<0.000000e+00> : vector<16xf32>
    %2 = vector.multi_reduction <add>, %1, %cst [1] : vector<16x128xf32> to vector<16xf32>
    %3 = vector.shape_cast %2 : vector<16xf32> to vector<16x1xf32>
    %cst_2 = arith.constant 1.280000e+02 : f32
    %4 = vector.broadcast %cst_2 : f32 to vector<16x1xf32>
    %5 = arith.divf %3, %4 : vector<16x1xf32>
    %6 = vector.broadcast %5 : vector<16x1xf32> to vector<16x128xf32>
    %7 = arith.subf %1, %6 : vector<16x128xf32>
    %8 = arith.mulf %7, %7 : vector<16x128xf32>
    %cst_3 = arith.constant dense<0.000000e+00> : vector<16xf32>
    %9 = vector.multi_reduction <add>, %8, %cst_3 [1] : vector<16x128xf32> to vector<16xf32>
    %10 = vector.shape_cast %9 : vector<16xf32> to vector<16x1xf32>
    %cst_4 = arith.constant 1.280000e+02 : f32
    %11 = vector.broadcast %cst_4 : f32 to vector<16x1xf32>
    %12 = arith.divf %10, %11 : vector<16x1xf32>
    %cst_5 = arith.constant 9.99999974E-6 : f32
    %13 = vector.broadcast %cst_5 : f32 to vector<16x1xf32>
    %14 = arith.addf %12, %13 : vector<16x1xf32>
    %15 = math.rsqrt %14 : vector<16x1xf32>
    %16 = vector.broadcast %15 : vector<16x1xf32> to vector<16x128xf32>
    %17 = arith.mulf %7, %16 : vector<16x128xf32>
    %18 = arith.truncf %17 : vector<16x128xf32> to vector<16x128xbf16>
    %c0_6 = arith.constant 0 : index
    %c0_7 = arith.constant 0 : index
    %19 = vector.load %arg2[%c0_6, %c0_7] : memref<128x128xbf16, #tpu.memory_space<vmem>>, vector<128x128xbf16>
    %cst_8 = arith.constant dense<0.000000e+00> : vector<16x128xf32>
    %20 = tpu.matmul %18, %19, %cst_8 {dimension_numbers = #tpu.dot_dimension_numbers<[1], [0], [0], [1], [0, 0, 1, 1], [], []>} : vector<16x128xbf16>, vector<128x128xbf16>, vector<16x128xf32> -> vector<16x128xf32>
    %21 = tpu.iota {dimensions = array<i32: 0>} : vector<16x16xi32>
    %22 = tpu.iota {dimensions = array<i32: 1>} : vector<16x16xi32>
    %23 = arith.cmpi sle, %22, %21 : vector<16x16xi32>
    %24 = arith.sitofp %21 : vector<16x16xi32> to vector<16x16xf32>
    %cst_9 = arith.constant 1.000000e+00 : f32
    %25 = vector.broadcast %cst_9 : f32 to vector<16x16xf32>
    %26 = arith.addf %24, %25 : vector<16x16xf32>
    %cst_10 = arith.constant 1.000000e+00 : f32
    %27 = vector.broadcast %cst_10 : f32 to vector<16x16xf32>
    %28 = arith.divf %27, %26 : vector<16x16xf32>
    %cst_11 = arith.constant 0.000000e+00 : f32
    %29 = vector.broadcast %cst_11 : f32 to vector<16x16xf32>
    %30 = arith.select %23, %28, %29 : vector<16x16xi1>, vector<16x16xf32>
    %31 = arith.truncf %30 : vector<16x16xf32> to vector<16x16xbf16>
    %32 = vector.shape_cast %20 : vector<16x128xf32> to vector<1x16x128xf32>
    %33 = arith.truncf %32 : vector<1x16x128xf32> to vector<1x16x128xbf16>
    %34 = vector.shape_cast %31 : vector<16x16xbf16> to vector<1x16x16xbf16>
    "tpu.trace_start"() <{level = 10 : i32, message = "bts,bsv->btv"}> : () -> ()
    %cst_12 = arith.constant dense<0.000000e+00> : vector<1x16x128xf32>
    %35 = tpu.matmul %34, %33, %cst_12 {dimension_numbers = #tpu.dot_dimension_numbers<[2], [1], [1], [2], [0, 0, 0, 1, 1, 2], [0], [0]>} : vector<1x16x16xbf16>, vector<1x16x128xbf16>, vector<1x16x128xf32> -> vector<1x16x128xf32>
    "tpu.trace_stop"() : () -> ()
    %36 = vector.shape_cast %35 : vector<1x16x128xf32> to vector<16x128xf32>
    %37 = arith.truncf %36 : vector<16x128xf32> to vector<16x128xbf16>
    %c0_13 = arith.constant 0 : index
    %c0_14 = arith.constant 0 : index
    %38 = vector.load %arg3[%c0_13, %c0_14] : memref<128x128xbf16, #tpu.memory_space<vmem>>, vector<128x128xbf16>
    %cst_15 = arith.constant dense<0.000000e+00> : vector<16x128xf32>
    %39 = tpu.matmul %37, %38, %cst_15 {dimension_numbers = #tpu.dot_dimension_numbers<[1], [0], [0], [1], [0, 0, 1, 1], [], []>} : vector<16x128xbf16>, vector<128x128xbf16>, vector<16x128xf32> -> vector<16x128xf32>
    %c0_16 = arith.constant 0 : index
    %c0_17 = arith.constant 0 : index
    %40 = vector.load %arg4[%c0_16, %c0_17] : memref<1x128xf32, #tpu.memory_space<vmem>>, vector<1x128xf32>
    %41 = vector.shape_cast %40 : vector<1x128xf32> to vector<128xf32>
    %42 = vector.shape_cast %41 : vector<128xf32> to vector<1x128xf32>
    %43 = vector.broadcast %42 : vector<1x128xf32> to vector<16x128xf32>
    %44 = arith.addf %39, %43 : vector<16x128xf32>
    %45 = arith.addf %1, %44 : vector<16x128xf32>
    %cst_18 = arith.constant dense<0.000000e+00> : vector<16xf32>
    %46 = vector.multi_reduction <add>, %45, %cst_18 [1] : vector<16x128xf32> to vector<16xf32>
    %47 = vector.shape_cast %46 : vector<16xf32> to vector<16x1xf32>
    %cst_19 = arith.constant 1.280000e+02 : f32
    %48 = vector.broadcast %cst_19 : f32 to vector<16x1xf32>
    %49 = arith.divf %47, %48 : vector<16x1xf32>
    %50 = vector.broadcast %49 : vector<16x1xf32> to vector<16x128xf32>
    %51 = arith.subf %45, %50 : vector<16x128xf32>
    %52 = arith.mulf %51, %51 : vector<16x128xf32>
    %cst_20 = arith.constant dense<0.000000e+00> : vector<16xf32>
    %53 = vector.multi_reduction <add>, %52, %cst_20 [1] : vector<16x128xf32> to vector<16xf32>
    %54 = vector.shape_cast %53 : vector<16xf32> to vector<16x1xf32>
    %cst_21 = arith.constant 1.280000e+02 : f32
    %55 = vector.broadcast %cst_21 : f32 to vector<16x1xf32>
    %56 = arith.divf %54, %55 : vector<16x1xf32>
    %cst_22 = arith.constant 9.99999974E-6 : f32
    %57 = vector.broadcast %cst_22 : f32 to vector<16x1xf32>
    %58 = arith.addf %56, %57 : vector<16x1xf32>
    %59 = math.rsqrt %58 : vector<16x1xf32>
    %60 = vector.broadcast %59 : vector<16x1xf32> to vector<16x128xf32>
    %61 = arith.mulf %51, %60 : vector<16x128xf32>
    %62 = arith.truncf %61 : vector<16x128xf32> to vector<16x128xbf16>
    %c0_23 = arith.constant 0 : index
    %c0_24 = arith.constant 0 : index
    %63 = vector.load %arg5[%c0_23, %c0_24] : memref<128x512xbf16, #tpu.memory_space<vmem>>, vector<128x512xbf16>
    %cst_25 = arith.constant dense<0.000000e+00> : vector<16x512xf32>
    %64 = tpu.matmul %62, %63, %cst_25 {dimension_numbers = #tpu.dot_dimension_numbers<[1], [0], [0], [1], [0, 0, 1, 1], [], []>} : vector<16x128xbf16>, vector<128x512xbf16>, vector<16x512xf32> -> vector<16x512xf32>
    %c0_26 = arith.constant 0 : index
    %c0_27 = arith.constant 0 : index
    %65 = vector.load %arg6[%c0_26, %c0_27] : memref<1x512xf32, #tpu.memory_space<vmem>>, vector<1x512xf32>
    %66 = vector.shape_cast %65 : vector<1x512xf32> to vector<512xf32>
    %67 = vector.shape_cast %66 : vector<512xf32> to vector<1x512xf32>
    %68 = vector.broadcast %67 : vector<1x512xf32> to vector<16x512xf32>
    %69 = arith.addf %64, %68 : vector<16x512xf32>
    %cst_28 = arith.constant 0.000000e+00 : f32
    %70 = vector.broadcast %cst_28 : f32 to vector<16x512xf32>
    %71 = arith.maximumf %69, %70 : vector<16x512xf32>
    %72 = arith.truncf %71 : vector<16x512xf32> to vector<16x512xbf16>
    %c0_29 = arith.constant 0 : index
    %c0_30 = arith.constant 0 : index
    %73 = vector.load %arg7[%c0_29, %c0_30] : memref<512x128xbf16, #tpu.memory_space<vmem>>, vector<512x128xbf16>
    %cst_31 = arith.constant dense<0.000000e+00> : vector<16x128xf32>
    %74 = tpu.matmul %72, %73, %cst_31 {dimension_numbers = #tpu.dot_dimension_numbers<[1], [0], [0], [1], [0, 0, 1, 1], [], []>} : vector<16x512xbf16>, vector<512x128xbf16>, vector<16x128xf32> -> vector<16x128xf32>
    %c0_32 = arith.constant 0 : index
    %c0_33 = arith.constant 0 : index
    %75 = vector.load %arg8[%c0_32, %c0_33] : memref<1x128xf32, #tpu.memory_space<vmem>>, vector<1x128xf32>
    %76 = vector.shape_cast %75 : vector<1x128xf32> to vector<128xf32>
    %77 = vector.shape_cast %76 : vector<128xf32> to vector<1x128xf32>
    %78 = vector.broadcast %77 : vector<1x128xf32> to vector<16x128xf32>
    %79 = arith.addf %74, %78 : vector<16x128xf32>
    %80 = arith.addf %45, %79 : vector<16x128xf32>
    %81 = vector.shape_cast %80 : vector<16x128xf32> to vector<1x16x128xf32>
    %c0_34 = arith.constant 0 : index
    %c0_35 = arith.constant 0 : index
    %c0_36 = arith.constant 0 : index
    %82 = vector.load %arg9[%c0_34, %c0_35, %c0_36] : memref<1x16x128xf32, #tpu.memory_space<vmem>>, vector<1x16x128xf32>
    tpu.vector_store %arg9[%c0_34, %c0_35, %c0_36], %81 {strides = array<i32>} : memref<1x16x128xf32, #tpu.memory_space<vmem>>, vector<1x16x128xf32>,
    return
  }
  func.func @transform_0(%arg0: i32) -> (i32, i32, i32) {
    %c0_i32 = arith.constant 0 : i32
    %c0_i32_0 = arith.constant 0 : i32
    %c0_i32_1 = arith.constant 0 : i32
    return %arg0, %c0_i32, %c0_i32_0 : i32, i32, i32
  }
  func.func @transform_1(%arg0: i32) -> (i32, i32) {
    %c0_i32 = arith.constant 0 : i32
    %c0_i32_0 = arith.constant 0 : i32
    %c0_i32_1 = arith.constant 0 : i32
    return %c0_i32, %c0_i32_0 : i32, i32
  }
  func.func @transform_2(%arg0: i32) -> (i32, i32) {
    %c0_i32 = arith.constant 0 : i32
    %c0_i32_0 = arith.constant 0 : i32
    %c0_i32_1 = arith.constant 0 : i32
    return %c0_i32, %c0_i32_0 : i32, i32
  }
  func.func @transform_3(%arg0: i32) -> (i32, i32) {
    %c0_i32 = arith.constant 0 : i32
    %c0_i32_0 = arith.constant 0 : i32
    %c0_i32_1 = arith.constant 0 : i32
    return %c0_i32, %c0_i32_0 : i32, i32
  }
  func.func @transform_4(%arg0: i32) -> (i32, i32) {
    %c0_i32 = arith.constant 0 : i32
    %c0_i32_0 = arith.constant 0 : i32
    %c0_i32_1 = arith.constant 0 : i32
    return %c0_i32, %c0_i32_0 : i32, i32
  }
  func.func @transform_5(%arg0: i32) -> (i32, i32) {
    %c0_i32 = arith.constant 0 : i32
    %c0_i32_0 = arith.constant 0 : i32
    %c0_i32_1 = arith.constant 0 : i32
    return %c0_i32, %c0_i32_0 : i32, i32
  }
  func.func @transform_6(%arg0: i32) -> (i32, i32) {
    %c0_i32 = arith.constant 0 : i32
    %c0_i32_0 = arith.constant 0 : i32
    %c0_i32_1 = arith.constant 0 : i32
    return %c0_i32, %c0_i32_0 : i32, i32
  }
  func.func @transform_7(%arg0: i32) -> (i32, i32) {
    %c0_i32 = arith.constant 0 : i32
    %c0_i32_0 = arith.constant 0 : i32
    %c0_i32_1 = arith.constant 0 : i32
    return %c0_i32, %c0_i32_0 : i32, i32
  }
  func.func @transform_8(%arg0: i32) -> (i32, i32, i32) {
    %c0_i32 = arith.constant 0 : i32
    %c0_i32_0 = arith.constant 0 : i32
    %c0_i32_1 = arith.constant 0 : i32
    return %arg0, %c0_i32, %c0_i32_0 : i32, i32, i32
  }
}

</mosaic_0001>

<llo_original>
// kernel: run_block4.1
$region0: #{run_block4.1}
  #allocation0 [shape = 'u32[]', space=smem, size = 0x4, offset = 0x4, fixed_abs, tag = 'smem constant byte address 0x4 - core index']
  #allocation1 [shape = 'u32[144,128]{1,0:T(1,128)}', space=vmem, size = 0x12000, scoped, tag = 'internal scratch']
  %s0 = inlined_call_operand.hbm [shape: f32[2,16,128], index: 0, kind: input, shape index: {}]
  %s1 = inlined_call_operand.hbm [shape: bf16[128,128], index: 1, kind: input, shape index: {}]
  %s2 = inlined_call_operand.hbm [shape: bf16[128,128], index: 2, kind: input, shape index: {}]
  %s3 = inlined_call_operand.vmem [shape: f32[1,128], index: 3, kind: input, shape index: {}]
  %s4 = inlined_call_operand.hbm [shape: bf16[128,512], index: 4, kind: input, shape index: {}]
  %s5 = inlined_call_operand.hbm [shape: f32[1,512], index: 5, kind: input, shape index: {}]
  %s6 = inlined_call_operand.hbm [shape: bf16[512,128], index: 6, kind: input, shape index: {}]
  %s7 = inlined_call_operand.vmem [shape: f32[1,128], index: 7, kind: input, shape index: {}]
  %s8 = inlined_call_operand.hbm [shape: f32[2,16,128], index: 8, kind: output, shape index: {}]
  %s9 = sld [smem:[#allocation0]]
  $region89: #{run_block4.1} parent=0
    _
  %s11 = ssub.s32 1, %s9
  %s12 = scalar_select 0, %s11, %s9
  $region1: #{run_block4.1} parent=0
    #allocation2 [shape = 'u8[16384]{0}', space=vmem, size = 0x4000, scoped, tag = 'input window, operand 0']
    #allocation3 [shape = 's32[2]{0}', space=sflag, size = 0x8, scoped, tag = 'scoped memory for run_block4.1']
    #allocation4 [shape = 's32[2]{0}', space=sflag, size = 0x8, scoped, tag = 'scoped memory for run_block4.1']
    #allocation5 [shape = 'u8[32768]{0}', space=vmem, size = 0x8000, scoped, tag = 'input window, operand 1, single buffered']
    #allocation6 [shape = 's32[1]{0}', space=sflag, size = 0x4, scoped, tag = 'scoped memory for run_block4.1']
    #allocation7 [shape = 'u8[32768]{0}', space=vmem, size = 0x8000, scoped, tag = 'input window, operand 2, single buffered']
    #allocation8 [shape = 'u8[131072]{0}', space=vmem, size = 0x20000, scoped, tag = 'input window, operand 4, single buffered']
    #allocation9 [shape = 's32[1]{0}', space=sflag, size = 0x4, scoped, tag = 'scoped memory for run_block4.1']
    #allocation10 [shape = 'u8[2048]{0}', space=vmem, size = 0x800, scoped, tag = 'input window, operand 5, single buffered']
    #allocation11 [shape = 'u8[131072]{0}', space=vmem, size = 0x20000, scoped, tag = 'input window, operand 6, single buffered']
    #allocation12 [shape = 's32[1]{0}', space=sflag, size = 0x4, scoped, tag = 'scoped memory for run_block4.1']
    #allocation13 [shape = 'u8[16384]{0}', space=vmem, size = 0x4000, scoped, tag = 'output window, operand 0']
    %13 = vsyncpa [#allocation3], 0
    %s14 = scalar_lea.sflag [#allocation3], 1
    %15 = vsyncpa %s14, 0
    %16 = vsyncpa [#allocation6], 0
    %17 = vsyncpa [#allocation9], 0
    %18 = vsyncpa [#allocation12], 0
    %19 = vsyncpa [#allocation4], 0
    %s20 = scalar_lea.sflag [#allocation4], 1
    %21 = vsyncpa %s20, 0
    loop: start=0, step=1, limit=4
    $region2: #{run_block4.1} parent=1 // loop_pre_header
      _
    $region3: #{run_block4.1} parent=1 // loop_header
      %s23 = sphi 0, %s27
      %p24 = scmp.ge.s32.totalorder %s23, 4
      %s33 = sphi 0, %s35
      %s36 = sphi 0, %s33
      %s37 = sphi 0, %s36
      %s53 = sphi 0, %s37
      %s57 = sphi 0, %s57
      %s59 = sphi 0, %s57
      %s60 = sphi 0, %s59
      %s74 = sphi 0, %s60
      %s78 = sphi 0, %s78
      %s80 = sphi 0, %s78
      %s81 = sphi 0, %s80
      %s95 = sphi 0, %s81
      %s99 = sphi 0, %s99
      %s101 = sphi 0, %s99
      %s102 = sphi 0, %s101
      %s116 = sphi 0, %s102
      %s120 = sphi 0, %s120
      %s122 = sphi 0, %s120
      %s123 = sphi 0, %s122
      %s137 = sphi 0, %s123
      %s141 = sphi 0, %s141
      %s143 = sphi 0, %s141
      %s144 = sphi 0, %s143
      %s158 = sphi 0, %s144
      %s162 = sphi 0, %s162
      %s164 = sphi 0, %s162
      %s165 = sphi 0, %s164
      %s179 = sphi 0, %s165
      %s183 = sphi 0, %s183
      %s185 = sphi 0, %s183
      %s186 = sphi 0, %s185
      %s200 = sphi 0, %s186
      %s206 = sphi 0, %s208
      %s209 = sphi 0, %s206
      %s210 = sphi 0, %s209
      %s226 = sphi 0, %s210
    $region4: #{run_block4.1} parent=1 // loop_header_branch
      %26 = sbr.rel (%p24) target = $region8
    $region5: #{run_block4.1} parent=1 // loop_body
      %s28 = ssub.s32 %s23, 1
      %s29 = ssub.s32 %s23, 2
      %s30 = sadd.s32 %s23, 1
      %s31 = ssub.s32 %s23, %s30
      %p32 = scmp.eq.s32.totalorder %s31, 0
      %s34 = sadd.s32 %s33, 1
      %s35 = scalar_select %p32, %s33, %s34
      %p38 = pneg %p32
      %p39 = scmp.eq.s32.totalorder %s23, 1
      %p40 = por %p38, %p39
      %p41 = scmp.ne.s32.totalorder %s33, %s36
      %p42 = scmp.eq.s32.totalorder %s23, 0
      %p43 = por %p41, %p42
      %p44 = scmp.ne.s32.totalorder %s33, %s36
      %p45 = scmp.eq.s32.totalorder %s28, 1
      %p46 = por %p44, %p45
      %p47 = scmp.ne.s32.totalorder %s36, %s37
      %p48 = scmp.eq.s32.totalorder %s28, 0
      %p49 = por %p47, %p48
      %p50 = scmp.ne.s32.totalorder %s36, %s37
      %p51 = scmp.eq.s32.totalorder %s29, 1
      %p52 = por %p50, %p51
      %p54 = scmp.ne.s32.totalorder %s37, %s53
      %p55 = scmp.eq.s32.totalorder %s29, 0
      %p56 = por %p54, %p55
      %s58 = sadd.s32 %s57, 1
      %p61 = scmp.eq.s32.totalorder %s23, 1
      %p62 = scmp.ne.s32.totalorder %s57, %s59
      %p63 = scmp.eq.s32.totalorder %s23, 0
      %p64 = por %p62, %p63
      %p65 = scmp.ne.s32.totalorder %s57, %s59
      %p66 = scmp.eq.s32.totalorder %s28, 1
      %p67 = por %p65, %p66
      %p68 = scmp.ne.s32.totalorder %s59, %s60
      %p69 = scmp.eq.s32.totalorder %s28, 0
      %p70 = por %p68, %p69
      %p71 = scmp.ne.s32.totalorder %s59, %s60
      %p72 = scmp.eq.s32.totalorder %s29, 1
      %p73 = por %p71, %p72
      %p75 = scmp.ne.s32.totalorder %s60, %s74
      %p76 = scmp.eq.s32.totalorder %s29, 0
      %p77 = por %p75, %p76
      %s79 = sadd.s32 %s78, 1
      %p82 = scmp.eq.s32.totalorder %s23, 1
      %p83 = scmp.ne.s32.totalorder %s78, %s80
      %p84 = scmp.eq.s32.totalorder %s23, 0
      %p85 = por %p83, %p84
      %p86 = scmp.ne.s32.totalorder %s78, %s80
      %p87 = scmp.eq.s32.totalorder %s28, 1
      %p88 = por %p86, %p87
      %p89 = scmp.ne.s32.totalorder %s80, %s81
      %p90 = scmp.eq.s32.totalorder %s28, 0
      %p91 = por %p89, %p90
      %p92 = scmp.ne.s32.totalorder %s80, %s81
      %p93 = scmp.eq.s32.totalorder %s29, 1
      %p94 = por %p92, %p93
      %p96 = scmp.ne.s32.totalorder %s81, %s95
      %p97 = scmp.eq.s32.totalorder %s29, 0
      %p98 = por %p96, %p97
      %s100 = sadd.s32 %s99, 1
      %p103 = scmp.eq.s32.totalorder %s23, 1
      %p104 = scmp.ne.s32.totalorder %s99, %s101
      %p105 = scmp.eq.s32.totalorder %s23, 0
      %p106 = por %p104, %p105
      %p107 = scmp.ne.s32.totalorder %s99, %s101
      %p108 = scmp.eq.s32.totalorder %s28, 1
      %p109 = por %p107, %p108
      %p110 = scmp.ne.s32.totalorder %s101, %s102
      %p111 = scmp.eq.s32.totalorder %s28, 0
      %p112 = por %p110, %p111
      %p113 = scmp.ne.s32.totalorder %s101, %s102
      %p114 = scmp.eq.s32.totalorder %s29, 1
      %p115 = por %p113, %p114
      %p117 = scmp.ne.s32.totalorder %s102, %s116
      %p118 = scmp.eq.s32.totalorder %s29, 0
      %p119 = por %p117, %p118
      %s121 = sadd.s32 %s120, 1
      %p124 = scmp.eq.s32.totalorder %s23, 1
      %p125 = scmp.ne.s32.totalorder %s120, %s122
      %p126 = scmp.eq.s32.totalorder %s23, 0
      %p127 = por %p125, %p126
      %p128 = scmp.ne.s32.totalorder %s120, %s122
      %p129 = scmp.eq.s32.totalorder %s28, 1
      %p130 = por %p128, %p129
      %p131 = scmp.ne.s32.totalorder %s122, %s123
      %p132 = scmp.eq.s32.totalorder %s28, 0
      %p133 = por %p131, %p132
      %p134 = scmp.ne.s32.totalorder %s122, %s123
      %p135 = scmp.eq.s32.totalorder %s29, 1
      %p136 = por %p134, %p135
      %p138 = scmp.ne.s32.totalorder %s123, %s137
      %p139 = scmp.eq.s32.totalorder %s29, 0
      %p140 = por %p138, %p139
      %s142 = sadd.s32 %s141, 1
      %p145 = scmp.eq.s32.totalorder %s23, 1
      %p146 = scmp.ne.s32.totalorder %s141, %s143
      %p147 = scmp.eq.s32.totalorder %s23, 0
      %p148 = por %p146, %p147
      %p149 = scmp.ne.s32.totalorder %s141, %s143
      %p150 = scmp.eq.s32.totalorder %s28, 1
      %p151 = por %p149, %p150
      %p152 = scmp.ne.s32.totalorder %s143, %s144
      %p153 = scmp.eq.s32.totalorder %s28, 0
      %p154 = por %p152, %p153
      %p155 = scmp.ne.s32.totalorder %s143, %s144
      %p156 = scmp.eq.s32.totalorder %s29, 1
      %p157 = por %p155, %p156
      %p159 = scmp.ne.s32.totalorder %s144, %s158
      %p160 = scmp.eq.s32.totalorder %s29, 0
      %p161 = por %p159, %p160
      %s163 = sadd.s32 %s162, 1
      %p166 = scmp.eq.s32.totalorder %s23, 1
      %p167 = scmp.ne.s32.totalorder %s162, %s164
      %p168 = scmp.eq.s32.totalorder %s23, 0
      %p169 = por %p167, %p168
      %p170 = scmp.ne.s32.totalorder %s162, %s164
      %p171 = scmp.eq.s32.totalorder %s28, 1
      %p172 = por %p170, %p171
      %p173 = scmp.ne.s32.totalorder %s164, %s165
      %p174 = scmp.eq.s32.totalorder %s28, 0
      %p175 = por %p173, %p174
      %p176 = scmp.ne.s32.totalorder %s164, %s165
      %p177 = scmp.eq.s32.totalorder %s29, 1
      %p178 = por %p176, %p177
      %p180 = scmp.ne.s32.totalorder %s165, %s179
      %p181 = scmp.eq.s32.totalorder %s29, 0
      %p182 = por %p180, %p181
      %s184 = sadd.s32 %s183, 1
      %p187 = scmp.eq.s32.totalorder %s23, 1
      %p188 = scmp.ne.s32.totalorder %s183, %s185
      %p189 = scmp.eq.s32.totalorder %s23, 0
      %p190 = por %p188, %p189
      %p191 = scmp.ne.s32.totalorder %s183, %s185
      %p192 = scmp.eq.s32.totalorder %s28, 1
      %p193 = por %p191, %p192
      %p194 = scmp.ne.s32.totalorder %s185, %s186
      %p195 = scmp.eq.s32.totalorder %s28, 0
      %p196 = por %p194, %p195
      %p197 = scmp.ne.s32.totalorder %s185, %s186
      %p198 = scmp.eq.s32.totalorder %s29, 1
      %p199 = por %p197, %p198
      %p201 = scmp.ne.s32.totalorder %s186, %s200
      %p202 = scmp.eq.s32.totalorder %s29, 0
      %p203 = por %p201, %p202
      %s204 = ssub.s32 %s23, %s30
      %p205 = scmp.eq.s32.totalorder %s204, 0
      %s207 = sadd.s32 %s206, 1
      %s208 = scalar_select %p205, %s206, %s207
      %p211 = pneg %p205
      %p212 = scmp.eq.s32.totalorder %s23, 1
      %p213 = por %p211, %p212
      %p214 = scmp.ne.s32.totalorder %s206, %s209
      %p215 = scmp.eq.s32.totalorder %s23, 0
      %p216 = por %p214, %p215
      %p217 = scmp.ne.s32.totalorder %s206, %s209
      %p218 = scmp.eq.s32.totalorder %s28, 1
      %p219 = por %p217, %p218
      %p220 = scmp.ne.s32.totalorder %s209, %s210
      %p221 = scmp.eq.s32.totalorder %s28, 0
      %p222 = por %p220, %p221
      %p223 = scmp.ne.s32.totalorder %s209, %s210
      %p224 = scmp.eq.s32.totalorder %s29, 1
      %p225 = por %p223, %p224
      %p227 = scmp.ne.s32.totalorder %s210, %s226
      %p228 = scmp.eq.s32.totalorder %s29, 0
      %p229 = por %p227, %p228
      %p230 = scmp.le.s32.totalorder 1, %s23
      %p231 = scmp.lt.s32.totalorder %s23, 3
      %p232 = pnand %p230, %p231
      %p233 = pneg %p232
      // Predicated region
      $region9: #{run_block4.1} parent=5 // pred_check
        _
      $region10: #{run_block4.1} parent=5 // pred_check_branch
        %235 = sbr.rel (%p232) target = $region12
      $region11: #{run_block4.1} parent=5 // pred_region
        %s236 = ssub.s32 %s23, 1
        // Predicated region
        $region13: #{run_block4.1} parent=11 // pred_check
          %p237 = pneg %p70
        $region14: #{run_block4.1} parent=11 // pred_check_branch
          %239 = sbr.rel (%p237) target = $region16
        $region15: #{run_block4.1} parent=11 // pred_region
          %s241 = ssub.s32 1024, 1024
          %242 = vsyncadd [#allocation6], %s241
          %s243 = sshll.u32 [#allocation5], 4
          %s244 = int_to_ptr.vmem [resolvable:$true] %s243
          %249 = dma.hbm_to_vmem [thread:$0]  %s1, 1024, %s244, [#allocation6], 64, 64, 4
        $region16: #{run_block4.1} parent=11 // pred_fallthru
          _
        // Predicated region
        $region17: #{run_block4.1} parent=11 // pred_check
          %p250 = pneg %p91
        $region18: #{run_block4.1} parent=11 // pred_check_branch
          %252 = sbr.rel (%p250) target = $region20
        $region19: #{run_block4.1} parent=11 // pred_region
          %s254 = ssub.s32 1024, 1024
          %255 = vsyncadd [#allocation6], %s254
          %s256 = sshll.u32 [#allocation7], 4
          %s257 = int_to_ptr.vmem [resolvable:$true] %s256
          %262 = dma.hbm_to_vmem [thread:$0]  %s2, 1024, %s257, [#allocation6], 64, 64, 4
        $region20: #{run_block4.1} parent=11 // pred_fallthru
          _
        // Predicated region
        $region21: #{run_block4.1} parent=11 // pred_check
          %p263 = pneg %p112
        $region22: #{run_block4.1} parent=11 // pred_check_branch
          %265 = sbr.rel (%p263) target = $region24
        $region23: #{run_block4.1} parent=11 // pred_region
          _
        $region24: #{run_block4.1} parent=11 // pred_fallthru
          _
        // Predicated region
        $region25: #{run_block4.1} parent=11 // pred_check
          %p266 = pneg %p133
        $region26: #{run_block4.1} parent=11 // pred_check_branch
          %268 = sbr.rel (%p266) target = $region28
        $region27: #{run_block4.1} parent=11 // pred_region
          %s270 = ssub.s32 4096, 4096
          %271 = vsyncadd [#allocation9], %s270
          %s272 = sshll.u32 [#allocation8], 4
          %s273 = int_to_ptr.vmem [resolvable:$true] %s272
          %278 = dma.hbm_to_vmem [thread:$0]  %s4, 4096, %s273, [#allocation9], 256, 256, 16
        $region28: #{run_block4.1} parent=11 // pred_fallthru
          _
        // Predicated region
        $region29: #{run_block4.1} parent=11 // pred_check
          %p279 = pneg %p154
        $region30: #{run_block4.1} parent=11 // pred_check_branch
          %281 = sbr.rel (%p279) target = $region32
        $region31: #{run_block4.1} parent=11 // pred_region
          %s283 = ssub.s32 64, 64
          %284 = vsyncadd [#allocation9], %s283
          %s286 = sshll.u32 [#allocation10], 4
          %s287 = int_to_ptr.vmem [resolvable:$true] %s286
          %289 = dma.hbm_to_vmem [thread:$0]  %s5, 64, %s287, [#allocation9]
        $region32: #{run_block4.1} parent=11 // pred_fallthru
          _
        // Predicated region
        $region33: #{run_block4.1} parent=11 // pred_check
          %p290 = pneg %p175
        $region34: #{run_block4.1} parent=11 // pred_check_branch
          %292 = sbr.rel (%p290) target = $region36
        $region35: #{run_block4.1} parent=11 // pred_region
          %s294 = ssub.s32 4096, 4096
          %295 = vsyncadd [#allocation12], %s294
          %s296 = sshll.u32 [#allocation11], 4
          %s297 = int_to_ptr.vmem [resolvable:$true] %s296
          %302 = dma.hbm_to_vmem [thread:$0]  %s6, 4096, %s297, [#allocation12], 64, 64, 4
        $region36: #{run_block4.1} parent=11 // pred_fallthru
          _
        // Predicated region
        $region37: #{run_block4.1} parent=11 // pred_check
          %p303 = pneg %p196
        $region38: #{run_block4.1} parent=11 // pred_check_branch
          %305 = sbr.rel (%p303) target = $region40
        $region39: #{run_block4.1} parent=11 // pred_region
          _
        $region40: #{run_block4.1} parent=11 // pred_fallthru
          _
      $region12: #{run_block4.1} parent=5 // pred_fallthru
        _
      %p306 = scmp.lt.s32.totalorder %s23, 2
      // Predicated region
      $region41: #{run_block4.1} parent=5 // pred_check
        %p307 = pneg %p306
      $region42: #{run_block4.1} parent=5 // pred_check_branch
        %309 = sbr.rel (%p307) target = $region44
      $region43: #{run_block4.1} parent=5 // pred_region
        // Predicated region
        $region45: #{run_block4.1} parent=43 // pred_check
          %p310 = pneg %p43
        $region46: #{run_block4.1} parent=43 // pred_check_branch
          %312 = sbr.rel (%p310) target = $region48
        $region47: #{run_block4.1} parent=43 // pred_region
          %s313 = sand.u32 %s33, 1
          %s314 = scalar_lea.sflag [#allocation3], %s313
          %s315 = sand.u32 %s33, 1
          %s316 = smul.addr %s315, 16
          %s317 = scalar_lea.vmem [#allocation2], %s316
          %s319 = ssub.s32 256, 256
          %320 = vsyncadd %s314, %s319
          %s321 = smul.addr %s23, 2
          %s322 = smul.addr %s321, 128
          %s323 = scalar_lea.hbm %s0, %s322
          %s324 = sshll.u32 %s317, 4
          %s325 = int_to_ptr.vmem [resolvable:$true] %s324
          %330 = dma.hbm_to_vmem [thread:$0]  %s323, 256, %s325, %s314, 128, 128, 8
        $region48: #{run_block4.1} parent=43 // pred_fallthru
          _
      $region44: #{run_block4.1} parent=5 // pred_fallthru
        _
      %p331 = scmp.le.s32.totalorder 1, %s23
      %p332 = scmp.lt.s32.totalorder %s23, 3
      %p333 = pnand %p331, %p332
      %p334 = pneg %p333
      // Predicated region
      $region49: #{run_block4.1} parent=5 // pred_check
        _
      $region50: #{run_block4.1} parent=5 // pred_check_branch
        %336 = sbr.rel (%p333) target = $region52
      $region51: #{run_block4.1} parent=5 // pred_region
        %s337 = ssub.s32 %s23, 1
        %s338 = sand.u32 %s36, 1
        %s339 = scalar_lea.sflag [#allocation3], %s338
        %s340 = sand.u32 %s36, 1
        %s341 = smul.addr %s340, 16
        %s342 = scalar_lea.vmem [#allocation2], %s341
        // Predicated region
        $region53: #{run_block4.1} parent=51 // pred_check
          %p343 = pneg %p49
        $region54: #{run_block4.1} parent=51 // pred_check_branch
          %345 = sbr.rel (%p343) target = $region56
        $region55: #{run_block4.1} parent=51 // pred_region
          %346 = dma.done %s339, 256
        $region56: #{run_block4.1} parent=51 // pred_fallthru
          _
        // Predicated region
        $region57: #{run_block4.1} parent=51 // pred_check
          %p347 = pneg %p70
        $region58: #{run_block4.1} parent=51 // pred_check_branch
          %349 = sbr.rel (%p347) target = $region60
        $region59: #{run_block4.1} parent=51 // pred_region
          %350 = dma.done [#allocation6], 1024
        $region60: #{run_block4.1} parent=51 // pred_fallthru
          _
        // Predicated region
        $region61: #{run_block4.1} parent=51 // pred_check
          %p351 = pneg %p91
        $region62: #{run_block4.1} parent=51 // pred_check_branch
          %353 = sbr.rel (%p351) target = $region64
        $region63: #{run_block4.1} parent=51 // pred_region
          %354 = dma.done [#allocation6], 1024
        $region64: #{run_block4.1} parent=51 // pred_fallthru
          _
        // Predicated region
        $region65: #{run_block4.1} parent=51 // pred_check
          %p355 = pneg %p133
        $region66: #{run_block4.1} parent=51 // pred_check_branch
          %357 = sbr.rel (%p355) target = $region68
        $region67: #{run_block4.1} parent=51 // pred_region
          %358 = dma.done [#allocation9], 4096
        $region68: #{run_block4.1} parent=51 // pred_fallthru
          _
        // Predicated region
        $region69: #{run_block4.1} parent=51 // pred_check
          %p359 = pneg %p154
        $region70: #{run_block4.1} parent=51 // pred_check_branch
          %361 = sbr.rel (%p359) target = $region72
        $region71: #{run_block4.1} parent=51 // pred_region
          %362 = dma.done [#allocation9], 64
        $region72: #{run_block4.1} parent=51 // pred_fallthru
          _
        // Predicated region
        $region73: #{run_block4.1} parent=51 // pred_check
          %p363 = pneg %p175
        $region74: #{run_block4.1} parent=51 // pred_check_branch
          %365 = sbr.rel (%p363) target = $region76
        $region75: #{run_block4.1} parent=51 // pred_region
          %366 = dma.done [#allocation12], 4096
        $region76: #{run_block4.1} parent=51 // pred_fallthru
          _
        %s367 = sand.u32 %s36, 1
        %s368 = scalar_lea.sflag [#allocation3], %s367
        %s369 = sand.u32 %s36, 1
        %s370 = smul.addr %s369, 16
        %s371 = scalar_lea.vmem [#allocation2], %s370
        %p372 = pneg %p49
        %p373 = pneg %p46
        %p374 = pneg %p70
        %p375 = pneg %p67
        %p376 = pneg %p91
        %p377 = pneg %p88
        %p378 = pneg %p112
        %p379 = pneg %p109
        %p380 = pneg %p133
        %p381 = pneg %p130
        %p382 = pneg %p154
        %p383 = pneg %p151
        %p384 = pneg %p175
        %p385 = pneg %p172
        %p386 = pneg %p196
        %p387 = pneg %p193
        %p388 = pneg %p222
        %p389 = pneg %p219
        %s390 = sand.u32 %s209, 1
        %s391 = scalar_lea.sflag [#allocation4], %s390
        %s392 = sand.u32 %s209, 1
        %s393 = smul.addr %s392, 16
        %s394 = scalar_lea.vmem [#allocation13], %s393
        %v396 = vld [vmem:[%s342] sm:$0xff]
        %v397 = vld [vmem:[%s342 + $0x8] sm:$0xff]
        %398 = vadd.xlane.f32.xlu0 %v396
        %v399 = vpop.xlane.xlu0 %398
        %400 = vadd.xlane.f32.xlu0 %v397
        %v401 = vpop.xlane.xlu0 %400
        %v402 = vrcp.pop 128.0
        %v403 = vmul.f32 %v399, %v402
        %v404 = vmul.f32 %v401, %v402
        %v405 = vsub.f32 %v396, %v403
        %v406 = vsub.f32 %v397, %v404
        %v407 = vmul.f32 %v405, %v405
        %v408 = vmul.f32 %v406, %v406
        %409 = vadd.xlane.f32.xlu0 %v407
        %v410 = vpop.xlane.xlu0 %409
        %411 = vadd.xlane.f32.xlu0 %v408
        %v412 = vpop.xlane.xlu0 %411
        %v413 = vmul.f32 %v410, %v402
        %v414 = vmul.f32 %v412, %v402
        %v415 = vadd.f32 %v413, 1e-05
        %v416 = vadd.f32 %v414, 1e-05
        %v417 = vrsqrt.pop %v415
        %v418 = vrsqrt.pop %v416
        %v419 = vmul.f32 %v405, %v417
        %v420 = vmul.f32 %v406, %v418
        %v421 = vpack.c.bf16 %v420, %v419
        %v422 = vld [vmem:[#allocation5] sm:$0xf]
        %v423 = vld [vmem:[#allocation5 + $0x4] sm:$0xf]
        %v424 = vld [vmem:[#allocation5 + $0x8] sm:$0xf]
        %v425 = vld [vmem:[#allocation5 + $0xc] sm:$0xf]
        %v426 = vld [vmem:[#allocation5 + $0x10] sm:$0xf]
        %v427 = vld [vmem:[#allocation5 + $0x14] sm:$0xf]
        %v428 = vld [vmem:[#allocation5 + $0x18] sm:$0xf]
        %v429 = vld [vmem:[#allocation5 + $0x1c] sm:$0xf]
        %v430 = vld [vmem:[#allocation5 + $0x20] sm:$0xf]
        %v431 = vld [vmem:[#allocation5 + $0x24] sm:$0xf]
        %v432 = vld [vmem:[#allocation5 + $0x28] sm:$0xf]
        %v433 = vld [vmem:[#allocation5 + $0x2c] sm:$0xf]
        %v434 = vld [vmem:[#allocation5 + $0x30] sm:$0xf]
        %v435 = vld [vmem:[#allocation5 + $0x34] sm:$0xf]
        %v436 = vld [vmem:[#allocation5 + $0x38] sm:$0xf]
        %v437 = vld [vmem:[#allocation5 + $0x3c] sm:$0xf]
        %v454 = vunpack.c.l.b16 %v422
        %v455 = vunpack.c.l.b16 %v423
        %v456 = vunpack.c.l.b16 %v424
        %v457 = vunpack.c.l.b16 %v425
        %v458 = vunpack.c.l.b16 %v426
        %v459 = vunpack.c.l.b16 %v427
        %v460 = vunpack.c.l.b16 %v428
        %v461 = vunpack.c.l.b16 %v429
        %v462 = vunpack.c.l.b16 %v430
        %v463 = vunpack.c.l.b16 %v431
        %v464 = vunpack.c.l.b16 %v432
        %v465 = vunpack.c.l.b16 %v433
        %v466 = vunpack.c.l.b16 %v434
        %v467 = vunpack.c.l.b16 %v435
        %v468 = vunpack.c.l.b16 %v436
        %v469 = vunpack.c.l.b16 %v437
        %v470 = vpack.c.b16 %v455, %v454
        %v471 = vpack.c.b16 %v457, %v456
        %v472 = vpack.c.b16 %v459, %v458
        %v473 = vpack.c.b16 %v461, %v460
        %v474 = vpack.c.b16 %v463, %v462
        %v475 = vpack.c.b16 %v465, %v464
        %v476 = vpack.c.b16 %v467, %v466
        %v477 = vpack.c.b16 %v469, %v468
        %486 = vmatprep.subr.bf16.mxu0 0
        %487 = vmatpush1.bf16.msra.mxu0 %v470
        %488 = vmatprep.subr.bf16.mxu0 0
        %489 = vmatpush1.bf16.msra.mxu0 %v471
        %490 = vmatprep.subr.bf16.mxu0 0
        %491 = vmatpush1.bf16.msra.mxu0 %v472
        %492 = vmatprep.subr.bf16.mxu0 0
        %493 = vmatpush1.bf16.msra.mxu0 %v473
        %494 = vmatprep.subr.bf16.mxu0 0
        %495 = vmatpush1.bf16.msra.mxu0 %v474
        %496 = vmatprep.subr.bf16.mxu0 0
        %497 = vmatpush1.bf16.msra.mxu0 %v475
        %498 = vmatprep.subr.bf16.mxu0 0
        %499 = vmatpush1.bf16.msra.mxu0 %v476
        %500 = vmatprep.subr.bf16.mxu0 0
        %501 = vmatpush1.bf16.msra.mxu0 %v477
        %502 = vmatprep.subr.bf16.mxu0 0
        %503 = vmatpush1.bf16.msra.mxu0 0
        %504 = vmatprep.subr.bf16.mxu0 0
        %505 = vmatpush1.bf16.msra.mxu0 0
        %506 = vmatprep.subr.bf16.mxu0 0
        %507 = vmatpush1.bf16.msra.mxu0 0
        %508 = vmatprep.subr.bf16.mxu0 0
        %509 = vmatpush1.bf16.msra.mxu0 0
        %510 = vmatprep.subr.bf16.mxu0 0
        %511 = vmatpush1.bf16.msra.mxu0 0
        %512 = vmatprep.subr.bf16.mxu0 0
        %513 = vmatpush1.bf16.msra.mxu0 0
        %514 = vmatprep.subr.bf16.mxu0 0
        %515 = vmatpush1.bf16.msra.mxu0 0
        %516 = vmatprep.subr.bf16.mxu0 0
        %517 = vmatpush1.bf16.msra.mxu0 0
        %518 = vmatprep.mubr.bf16.mxu0 0
        %519 = vmatmul.mubr.bf16.gmra.mrb[0].mxu0 %v421
        %v520 = vpop.f32.mrb[0].mxu0
        %v521 = vadd.f32 0.0, %v520
        %v522 = vpop.f32.mrb[0].mxu0
        %v523 = vpop.f32.mrb[0].mxu0
        %v524 = vadd.f32 0.0, %v523
        %v525 = vpop.f32.mrb[0].mxu0
        %526 = vdwg.mxu0
        %v527 = vlaneseq
        %v528 = vshrl.u32 %v527, 7
        %v529 = vadd.s32 %v528, 8
        %v530 = vlaneseq
        %v531 = vand.u32 %v530, 127
        %vm532 = vcmp.le.s32.totalorder %v531, %v528
        %vm533 = vcmp.le.s32.totalorder %v531, %v529
        %v534 = vcvt.s32.f32 %v528
        %v535 = vcvt.s32.f32 %v529
        %v536 = vadd.f32 %v534, 1.0
        %v537 = vadd.f32 %v535, 1.0
        %v538 = vrcp.pop %v536
        %v539 = vmul.f32 1.0, %v538
        %v540 = vrcp.pop %v537
        %v541 = vmul.f32 1.0, %v540
        %v542 = vsel %vm532, %v539, 0.0
        %v543 = vsel %vm533, %v541, 0.0
        %v544 = vpack.c.bf16 %v543, %v542
        %v545 = vpack.c.bf16 %v524, %v521
        %vm546 = vcmask 130048
        %v548 = vsel %vm546, %v544, 0
        %550 = vmatprep.subr.bf16.mxu0 0
        %551 = vmatpush1.bf16.msra.mxu0 %v545
        %552 = vmatprep.subr.bf16.mxu0 0
        %553 = vmatpush1.bf16.msra.mxu0 0
        %554 = vmatprep.subr.bf16.mxu0 0
        %555 = vmatpush1.bf16.msra.mxu0 0
        %556 = vmatprep.subr.bf16.mxu0 0
        %557 = vmatpush1.bf16.msra.mxu0 0
        %558 = vmatprep.subr.bf16.mxu0 0
        %559 = vmatpush1.bf16.msra.mxu0 0
        %560 = vmatprep.subr.bf16.mxu0 0
        %561 = vmatpush1.bf16.msra.mxu0 0
        %562 = vmatprep.subr.bf16.mxu0 0
        %563 = vmatpush1.bf16.msra.mxu0 0
        %564 = vmatprep.subr.bf16.mxu0 0
        %565 = vmatpush1.bf16.msra.mxu0 0
        %566 = vmatprep.subr.bf16.mxu0 0
        %567 = vmatpush1.bf16.msra.mxu0 0
        %568 = vmatprep.subr.bf16.mxu0 0
        %569 = vmatpush1.bf16.msra.mxu0 0
        %570 = vmatprep.subr.bf16.mxu0 0
        %571 = vmatpush1.bf16.msra.mxu0 0
        %572 = vmatprep.subr.bf16.mxu0 0
        %573 = vmatpush1.bf16.msra.mxu0 0
        %574 = vmatprep.subr.bf16.mxu0 0
        %575 = vmatpush1.bf16.msra.mxu0 0
        %576 = vmatprep.subr.bf16.mxu0 0
        %577 = vmatpush1.bf16.msra.mxu0 0
        %578 = vmatprep.subr.bf16.mxu0 0
        %579 = vmatpush1.bf16.msra.mxu0 0
        %580 = vmatprep.subr.bf16.mxu0 0
        %581 = vmatpush1.bf16.msra.mxu0 0
        %582 = vmatprep.mubr.bf16.mxu0 0
        %583 = vmatmul.mubr.bf16.gmra.mrb[0].mxu0 %v548
        %v584 = vpop.f32.mrb[0].mxu0
        %v585 = vadd.f32 0.0, %v584
        %v586 = vpop.f32.mrb[0].mxu0
        %v587 = vpop.f32.mrb[0].mxu0
        %v588 = vadd.f32 0.0, %v587
        %v589 = vpop.f32.mrb[0].mxu0
        %590 = vdwg.mxu0
        %v591 = vpack.c.bf16 %v588, %v585
        %v592 = vld [vmem:[#allocation7] sm:$0xf]
        %v593 = vld [vmem:[#allocation7 + $0x4] sm:$0xf]
        %v594 = vld [vmem:[#allocation7 + $0x8] sm:$0xf]
        %v595 = vld [vmem:[#allocation7 + $0xc] sm:$0xf]
        %v596 = vld [vmem:[#allocation7 + $0x10] sm:$0xf]
        %v597 = vld [vmem:[#allocation7 + $0x14] sm:$0xf]
        %v598 = vld [vmem:[#allocation7 + $0x18] sm:$0xf]
        %v599 = vld [vmem:[#allocation7 + $0x1c] sm:$0xf]
        %v600 = vld [vmem:[#allocation7 + $0x20] sm:$0xf]
        %v601 = vld [vmem:[#allocation7 + $0x24] sm:$0xf]
        %v602 = vld [vmem:[#allocation7 + $0x28] sm:$0xf]
        %v603 = vld [vmem:[#allocation7 + $0x2c] sm:$0xf]
        %v604 = vld [vmem:[#allocation7 + $0x30] sm:$0xf]
        %v605 = vld [vmem:[#allocation7 + $0x34] sm:$0xf]
        %v606 = vld [vmem:[#allocation7 + $0x38] sm:$0xf]
        %v607 = vld [vmem:[#allocation7 + $0x3c] sm:$0xf]
        %v608 = vld [vmem:[%s3] sm:$0x1]
        %v610 = vlaneseq
        %v611 = vshrl.u32 %v610, 7
        %v612 = vsub.s32 0, %v611
        %v613 = vrot.slane %v608, %v612
        %v631 = vunpack.c.l.b16 %v592
        %v632 = vunpack.c.l.b16 %v593
        %v633 = vunpack.c.l.b16 %v594
        %v634 = vunpack.c.l.b16 %v595
        %v635 = vunpack.c.l.b16 %v596
        %v636 = vunpack.c.l.b16 %v597
        %v637 = vunpack.c.l.b16 %v598
        %v638 = vunpack.c.l.b16 %v599
        %v639 = vunpack.c.l.b16 %v600
        %v640 = vunpack.c.l.b16 %v601
        %v641 = vunpack.c.l.b16 %v602
        %v642 = vunpack.c.l.b16 %v603
        %v643 = vunpack.c.l.b16 %v604
        %v644 = vunpack.c.l.b16 %v605
        %v645 = vunpack.c.l.b16 %v606
        %v646 = vunpack.c.l.b16 %v607
        %v647 = vpack.c.b16 %v632, %v631
        %v648 = vpack.c.b16 %v634, %v633
        %v649 = vpack.c.b16 %v636, %v635
        %v650 = vpack.c.b16 %v638, %v637
        %v651 = vpack.c.b16 %v640, %v639
        %v652 = vpack.c.b16 %v642, %v641
        %v653 = vpack.c.b16 %v644, %v643
        %v654 = vpack.c.b16 %v646, %v645
        %663 = vmatprep.subr.bf16.mxu0 0
        %664 = vmatpush1.bf16.msra.mxu0 %v647
        %665 = vmatprep.subr.bf16.mxu0 0
        %666 = vmatpush1.bf16.msra.mxu0 %v648
        %667 = vmatprep.subr.bf16.mxu0 0
        %668 = vmatpush1.bf16.msra.mxu0 %v649
        %669 = vmatprep.subr.bf16.mxu0 0
        %670 = vmatpush1.bf16.msra.mxu0 %v650
        %671 = vmatprep.subr.bf16.mxu0 0
        %672 = vmatpush1.bf16.msra.mxu0 %v651
        %673 = vmatprep.subr.bf16.mxu0 0
        %674 = vmatpush1.bf16.msra.mxu0 %v652
        %675 = vmatprep.subr.bf16.mxu0 0
        %676 = vmatpush1.bf16.msra.mxu0 %v653
        %677 = vmatprep.subr.bf16.mxu0 0
        %678 = vmatpush1.bf16.msra.mxu0 %v654
        %679 = vmatprep.subr.bf16.mxu0 0
        %680 = vmatpush1.bf16.msra.mxu0 0
        %681 = vmatprep.subr.bf16.mxu0 0
        %682 = vmatpush1.bf16.msra.mxu0 0
        %683 = vmatprep.subr.bf16.mxu0 0
        %684 = vmatpush1.bf16.msra.mxu0 0
        %685 = vmatprep.subr.bf16.mxu0 0
        %686 = vmatpush1.bf16.msra.mxu0 0
        %687 = vmatprep.subr.bf16.mxu0 0
        %688 = vmatpush1.bf16.msra.mxu0 0
        %689 = vmatprep.subr.bf16.mxu0 0
        %690 = vmatpush1.bf16.msra.mxu0 0
        %691 = vmatprep.subr.bf16.mxu0 0
        %692 = vmatpush1.bf16.msra.mxu0 0
        %693 = vmatprep.subr.bf16.mxu0 0
        %694 = vmatpush1.bf16.msra.mxu0 0
        %695 = vmatprep.mubr.bf16.mxu0 0
        %696 = vmatmul.mubr.bf16.gmra.mrb[0].mxu0 %v591
        %v697 = vpop.f32.mrb[0].mxu0
        %v698 = vadd.f32 %v613, %v697
        %v699 = vpop.f32.mrb[0].mxu0
        %v700 = vpop.f32.mrb[0].mxu0
        %v701 = vadd.f32 %v613, %v700
        %v702 = vpop.f32.mrb[0].mxu0
        %703 = vdwg.mxu0
        %v704 = vadd.f32 %v396, %v698
        %v705 = vadd.f32 %v397, %v701
        %706 = vadd.xlane.f32.xlu0 %v704
        %v707 = vpop.xlane.xlu0 %706
        %708 = vadd.xlane.f32.xlu0 %v705
        %v709 = vpop.xlane.xlu0 %708
        %v710 = vmul.f32 %v707, %v402
        %v711 = vmul.f32 %v709, %v402
        %v712 = vsub.f32 %v704, %v710
        %v713 = vsub.f32 %v705, %v711
        %v714 = vmul.f32 %v712, %v712
        %v715 = vmul.f32 %v713, %v713
        %716 = vadd.xlane.f32.xlu0 %v714
        %v717 = vpop.xlane.xlu0 %716
        %718 = vadd.xlane.f32.xlu0 %v715
        %v719 = vpop.xlane.xlu0 %718
        %v720 = vmul.f32 %v717, %v402
        %v721 = vmul.f32 %v719, %v402
        %v722 = vadd.f32 %v720, 1e-05
        %v723 = vadd.f32 %v721, 1e-05
        %v724 = vrsqrt.pop %v722
        %v725 = vrsqrt.pop %v723
        %v726 = vmul.f32 %v712, %v724
        %v727 = vmul.f32 %v713, %v725
        %v728 = vpack.c.bf16 %v727, %v726
        %v729 = vld [vmem:[#allocation8] sm:$0xff]
        %v730 = vld [vmem:[#allocation8 + $0x8] sm:$0xff]
        %v731 = vld [vmem:[#allocation8 + $0x10] sm:$0xff]
        %v732 = vld [vmem:[#allocation8 + $0x18] sm:$0xff]
        %v733 = vld [vmem:[#allocation8 + $0x20] sm:$0xff]
        %v734 = vld [vmem:[#allocation8 + $0x28] sm:$0xff]
        %v735 = vld [vmem:[#allocation8 + $0x30] sm:$0xff]
        %v736 = vld [vmem:[#allocation8 + $0x38] sm:$0xff]
        %v737 = vld [vmem:[#allocation8 + $0x40] sm:$0xff]
        %v738 = vld [vmem:[#allocation8 + $0x48] sm:$0xff]
        %v739 = vld [vmem:[#allocation8 + $0x50] sm:$0xff]
        %v740 = vld [vmem:[#allocation8 + $0x58] sm:$0xff]
        %v741 = vld [vmem:[#allocation8 + $0x60] sm:$0xff]
        %v742 = vld [vmem:[#allocation8 + $0x68] sm:$0xff]
        %v743 = vld [vmem:[#allocation8 + $0x70] sm:$0xff]
        %v744 = vld [vmem:[#allocation8 + $0x78] sm:$0xff]
        %v745 = vld [vmem:[#allocation8 + $0x80] sm:$0xff]
        %v746 = vld [vmem:[#allocation8 + $0x88] sm:$0xff]
        %v747 = vld [vmem:[#allocation8 + $0x90] sm:$0xff]
        %v748 = vld [vmem:[#allocation8 + $0x98] sm:$0xff]
        %v749 = vld [vmem:[#allocation8 + $0xa0] sm:$0xff]
        %v750 = vld [vmem:[#allocation8 + $0xa8] sm:$0xff]
        %v751 = vld [vmem:[#allocation8 + $0xb0] sm:$0xff]
        %v752 = vld [vmem:[#allocation8 + $0xb8] sm:$0xff]
        %v753 = vld [vmem:[#allocation8 + $0xc0] sm:$0xff]
        %v754 = vld [vmem:[#allocation8 + $0xc8] sm:$0xff]
        %v755 = vld [vmem:[#allocation8 + $0xd0] sm:$0xff]
        %v756 = vld [vmem:[#allocation8 + $0xd8] sm:$0xff]
        %v757 = vld [vmem:[#allocation8 + $0xe0] sm:$0xff]
        %v758 = vld [vmem:[#allocation8 + $0xe8] sm:$0xff]
        %v759 = vld [vmem:[#allocation8 + $0xf0] sm:$0xff]
        %v760 = vld [vmem:[#allocation8 + $0xf8] sm:$0xff]
        %v761 = vld [vmem:[#allocation10] sm:$0xf]
        %v763 = vlaneseq
        %v764 = vshrl.u32 %v763, 7
        %v765 = vsub.s32 0, %v764
        %v766 = vrot.slane %v761, %v765
        %v767 = vlaneseq
        %v768 = vshrl.u32 %v767, 7
        %v769 = vsub.s32 1, %v768
        %v770 = vrot.slane %v761, %v769
        %v771 = vlaneseq
        %v772 = vshrl.u32 %v771, 7
        %v773 = vsub.s32 2, %v772
        %v774 = vrot.slane %v761, %v773
        %v775 = vlaneseq
        %v776 = vshrl.u32 %v775, 7
        %v777 = vsub.s32 3, %v776
        %v778 = vrot.slane %v761, %v777
        %v815 = vunpack.c.l.b16 %v729
        %v816 = vunpack.c.h.b16 %v729
        %v817 = vunpack.c.l.b16 %v730
        %v818 = vunpack.c.h.b16 %v730
        %v819 = vunpack.c.l.b16 %v731
        %v820 = vunpack.c.h.b16 %v731
        %v821 = vunpack.c.l.b16 %v732
        %v822 = vunpack.c.h.b16 %v732
        %v823 = vunpack.c.l.b16 %v733
        %v824 = vunpack.c.h.b16 %v733
        %v825 = vunpack.c.l.b16 %v734
        %v826 = vunpack.c.h.b16 %v734
        %v827 = vunpack.c.l.b16 %v735
        %v828 = vunpack.c.h.b16 %v735
        %v829 = vunpack.c.l.b16 %v736
        %v830 = vunpack.c.h.b16 %v736
        %v831 = vunpack.c.l.b16 %v737
        %v832 = vunpack.c.h.b16 %v737
        %v833 = vunpack.c.l.b16 %v738
        %v834 = vunpack.c.h.b16 %v738
        %v835 = vunpack.c.l.b16 %v739
        %v836 = vunpack.c.h.b16 %v739
        %v837 = vunpack.c.l.b16 %v740
        %v838 = vunpack.c.h.b16 %v740
        %v839 = vunpack.c.l.b16 %v741
        %v840 = vunpack.c.h.b16 %v741
        %v841 = vunpack.c.l.b16 %v742
        %v842 = vunpack.c.h.b16 %v742
        %v843 = vunpack.c.l.b16 %v743
        %v844 = vunpack.c.h.b16 %v743
        %v845 = vunpack.c.l.b16 %v744
        %v846 = vunpack.c.h.b16 %v744
        %v847 = vunpack.c.l.b16 %v745
        %v848 = vunpack.c.h.b16 %v745
        %v849 = vunpack.c.l.b16 %v746
        %v850 = vunpack.c.h.b16 %v746
        %v851 = vunpack.c.l.b16 %v747
        %v852 = vunpack.c.h.b16 %v747
        %v853 = vunpack.c.l.b16 %v748
        %v854 = vunpack.c.h.b16 %v748
        %v855 = vunpack.c.l.b16 %v749
        %v856 = vunpack.c.h.b16 %v749
        %v857 = vunpack.c.l.b16 %v750
        %v858 = vunpack.c.h.b16 %v750
        %v859 = vunpack.c.l.b16 %v751
        %v860 = vunpack.c.h.b16 %v751
        %v861 = vunpack.c.l.b16 %v752
        %v862 = vunpack.c.h.b16 %v752
        %v863 = vunpack.c.l.b16 %v753
        %v864 = vunpack.c.h.b16 %v753
        %v865 = vunpack.c.l.b16 %v754
        %v866 = vunpack.c.h.b16 %v754
        %v867 = vunpack.c.l.b16 %v755
        %v868 = vunpack.c.h.b16 %v755
        %v869 = vunpack.c.l.b16 %v756
        %v870 = vunpack.c.h.b16 %v756
        %v871 = vunpack.c.l.b16 %v757
        %v872 = vunpack.c.h.b16 %v757
        %v873 = vunpack.c.l.b16 %v758
        %v874 = vunpack.c.h.b16 %v758
        %v875 = vunpack.c.l.b16 %v759
        %v876 = vunpack.c.h.b16 %v759
        %v877 = vunpack.c.l.b16 %v760
        %v878 = vunpack.c.h.b16 %v760
        %v879 = vpack.c.b16 %v819, %v815
        %v880 = vpack.c.b16 %v820, %v816
        %v881 = vpack.c.b16 %v821, %v817
        %v882 = vpack.c.b16 %v822, %v818
        %v883 = vpack.c.b16 %v827, %v823
        %v884 = vpack.c.b16 %v828, %v824
        %v885 = vpack.c.b16 %v829, %v825
        %v886 = vpack.c.b16 %v830, %v826
        %v887 = vpack.c.b16 %v835, %v831
        %v888 = vpack.c.b16 %v836, %v832
        %v889 = vpack.c.b16 %v837, %v833
        %v890 = vpack.c.b16 %v838, %v834
        %v891 = vpack.c.b16 %v843, %v839
        %v892 = vpack.c.b16 %v844, %v840
        %v893 = vpack.c.b16 %v845, %v841
        %v894 = vpack.c.b16 %v846, %v842
        %v895 = vpack.c.b16 %v851, %v847
        %v896 = vpack.c.b16 %v852, %v848
        %v897 = vpack.c.b16 %v853, %v849
        %v898 = vpack.c.b16 %v854, %v850
        %v899 = vpack.c.b16 %v859, %v855
        %v900 = vpack.c.b16 %v860, %v856
        %v901 = vpack.c.b16 %v861, %v857
        %v902 = vpack.c.b16 %v862, %v858
        %v903 = vpack.c.b16 %v867, %v863
        %v904 = vpack.c.b16 %v868, %v864
        %v905 = vpack.c.b16 %v869, %v865
        %v906 = vpack.c.b16 %v870, %v866
        %v907 = vpack.c.b16 %v875, %v871
        %v908 = vpack.c.b16 %v876, %v872
        %v909 = vpack.c.b16 %v877, %v873
        %v910 = vpack.c.b16 %v878, %v874
        %943 = vmatprep.subr.bf16.mxu0 %v880
        %944 = vmatpush1.bf16.msra.mxu0 %v879
        %945 = vmatprep.subr.bf16.mxu0 %v884
        %946 = vmatpush1.bf16.msra.mxu0 %v883
        %947 = vmatprep.subr.bf16.mxu0 %v888
        %948 = vmatpush1.bf16.msra.mxu0 %v887
        %949 = vmatprep.subr.bf16.mxu0 %v892
        %950 = vmatpush1.bf16.msra.mxu0 %v891
        %951 = vmatprep.subr.bf16.mxu0 %v896
        %952 = vmatpush1.bf16.msra.mxu0 %v895
        %953 = vmatprep.subr.bf16.mxu0 %v900
        %954 = vmatpush1.bf16.msra.mxu0 %v899
        %955 = vmatprep.subr.bf16.mxu0 %v904
        %956 = vmatpush1.bf16.msra.mxu0 %v903
        %957 = vmatprep.subr.bf16.mxu0 %v908
        %958 = vmatpush1.bf16.msra.mxu0 %v907
        %959 = vmatprep.subr.bf16.mxu0 0
        %960 = vmatpush1.bf16.msra.mxu0 0
        %961 = vmatprep.subr.bf16.mxu0 0
        %962 = vmatpush1.bf16.msra.mxu0 0
        %963 = vmatprep.subr.bf16.mxu0 0
        %964 = vmatpush1.bf16.msra.mxu0 0
        %965 = vmatprep.subr.bf16.mxu0 0
        %966 = vmatpush1.bf16.msra.mxu0 0
        %967 = vmatprep.subr.bf16.mxu0 0
        %968 = vmatpush1.bf16.msra.mxu0 0
        %969 = vmatprep.subr.bf16.mxu0 0
        %970 = vmatpush1.bf16.msra.mxu0 0
        %971 = vmatprep.subr.bf16.mxu0 0
        %972 = vmatpush1.bf16.msra.mxu0 0
        %973 = vmatprep.subr.bf16.mxu0 0
        %974 = vmatpush1.bf16.msra.mxu0 0
        %975 = vmatprep.mubr.bf16.mxu0 0
        %976 = vmatmul.mubr.bf16.gmra.mrb[0].mxu0 %v728
        %v977 = vpop.f32.mrb[0].mxu0
        %v978 = vadd.f32 %v766, %v977
        %v979 = vpop.f32.mrb[0].mxu0
        %v980 = vadd.f32 %v770, %v979
        %v981 = vpop.f32.mrb[0].mxu0
        %v982 = vadd.f32 %v766, %v981
        %v983 = vpop.f32.mrb[0].mxu0
        %v984 = vadd.f32 %v770, %v983
        %985 = vdwg.mxu0
        %986 = vmatprep.subr.bf16.mxu0 %v882
        %987 = vmatpush1.bf16.msra.mxu0 %v881
        %988 = vmatprep.subr.bf16.mxu0 %v886
        %989 = vmatpush1.bf16.msra.mxu0 %v885
        %990 = vmatprep.subr.bf16.mxu0 %v890
        %991 = vmatpush1.bf16.msra.mxu0 %v889
        %992 = vmatprep.subr.bf16.mxu0 %v894
        %993 = vmatpush1.bf16.msra.mxu0 %v893
        %994 = vmatprep.subr.bf16.mxu0 %v898
        %995 = vmatpush1.bf16.msra.mxu0 %v897
        %996 = vmatprep.subr.bf16.mxu0 %v902
        %997 = vmatpush1.bf16.msra.mxu0 %v901
        %998 = vmatprep.subr.bf16.mxu0 %v906
        %999 = vmatpush1.bf16.msra.mxu0 %v905
        %1000 = vmatprep.subr.bf16.mxu0 %v910
        %1001 = vmatpush1.bf16.msra.mxu0 %v909
        %1002 = vmatprep.subr.bf16.mxu0 0
        %1003 = vmatpush1.bf16.msra.mxu0 0
        %1004 = vmatprep.subr.bf16.mxu0 0
        %1005 = vmatpush1.bf16.msra.mxu0 0
        %1006 = vmatprep.subr.bf16.mxu0 0
        %1007 = vmatpush1.bf16.msra.mxu0 0
        %1008 = vmatprep.subr.bf16.mxu0 0
        %1009 = vmatpush1.bf16.msra.mxu0 0
        %1010 = vmatprep.subr.bf16.mxu0 0
        %1011 = vmatpush1.bf16.msra.mxu0 0
        %1012 = vmatprep.subr.bf16.mxu0 0
        %1013 = vmatpush1.bf16.msra.mxu0 0
        %1014 = vmatprep.subr.bf16.mxu0 0
        %1015 = vmatpush1.bf16.msra.mxu0 0
        %1016 = vmatprep.subr.bf16.mxu0 0
        %1017 = vmatpush1.bf16.msra.mxu0 0
        %1018 = vmatprep.mubr.bf16.mxu0 0
        %1019 = vmatmul.mubr.bf16.gmra.mrb[0].mxu0 %v728
        %v1020 = vpop.f32.mrb[0].mxu0
        %v1021 = vadd.f32 %v774, %v1020
        %v1022 = vpop.f32.mrb[0].mxu0
        %v1023 = vadd.f32 %v778, %v1022
        %v1024 = vpop.f32.mrb[0].mxu0
        %v1025 = vadd.f32 %v774, %v1024
        %v1026 = vpop.f32.mrb[0].mxu0
        %v1027 = vadd.f32 %v778, %v1026
        %1028 = vdwg.mxu0
        %v1029 = vmax.f32 %v978, 0.0
        %v1030 = vmax.f32 %v980, 0.0
        %v1031 = vmax.f32 %v1021, 0.0
        %v1032 = vmax.f32 %v1023, 0.0
        %v1033 = vmax.f32 %v982, 0.0
        %v1034 = vmax.f32 %v984, 0.0
        %v1035 = vmax.f32 %v1025, 0.0
        %v1036 = vmax.f32 %v1027, 0.0
        %v1037 = vpack.c.bf16 %v1033, %v1029
        %v1038 = vpack.c.bf16 %v1034, %v1030
        %v1039 = vpack.c.bf16 %v1035, %v1031
        %v1040 = vpack.c.bf16 %v1036, %v1032
        %v1041 = vld [vmem:[#allocation11] sm:$0xf]
        %v1042 = vld [vmem:[#allocation11 + $0x4] sm:$0xf]
        %v1043 = vld [vmem:[#allocation11 + $0x8] sm:$0xf]
        %v1044 = vld [vmem:[#allocation11 + $0xc] sm:$0xf]
        %v1045 = vld [vmem:[#allocation11 + $0x10] sm:$0xf]
        %v1046 = vld [vmem:[#allocation11 + $0x14] sm:$0xf]
        %v1047 = vld [vmem:[#allocation11 + $0x18] sm:$0xf]
        %v1048 = vld [vmem:[#allocation11 + $0x1c] sm:$0xf]
        %v1049 = vld [vmem:[#allocation11 + $0x20] sm:$0xf]
        %v1050 = vld [vmem:[#allocation11 + $0x24] sm:$0xf]
        %v1051 = vld [vmem:[#allocation11 + $0x28] sm:$0xf]
        %v1052 = vld [vmem:[#allocation11 + $0x2c] sm:$0xf]
        %v1053 = vld [vmem:[#allocation11 + $0x30] sm:$0xf]
        %v1054 = vld [vmem:[#allocation11 + $0x34] sm:$0xf]
        %v1055 = vld [vmem:[#allocation11 + $0x38] sm:$0xf]
        %v1056 = vld [vmem:[#allocation11 + $0x3c] sm:$0xf]
        %v1057 = vld [vmem:[#allocation11 + $0x40] sm:$0xf]
        %v1058 = vld [vmem:[#allocation11 + $0x44] sm:$0xf]
        %v1059 = vld [vmem:[#allocation11 + $0x48] sm:$0xf]
        %v1060 = vld [vmem:[#allocation11 + $0x4c] sm:$0xf]
        %v1061 = vld [vmem:[#allocation11 + $0x50] sm:$0xf]
        %v1062 = vld [vmem:[#allocation11 + $0x54] sm:$0xf]
        %v1063 = vld [vmem:[#allocation11 + $0x58] sm:$0xf]
        %v1064 = vld [vmem:[#allocation11 + $0x5c] sm:$0xf]
        %v1065 = vld [vmem:[#allocation11 + $0x60] sm:$0xf]
        %v1066 = vld [vmem:[#allocation11 + $0x64] sm:$0xf]
        %v1067 = vld [vmem:[#allocation11 + $0x68] sm:$0xf]
        %v1068 = vld [vmem:[#allocation11 + $0x6c] sm:$0xf]
        %v1069 = vld [vmem:[#allocation11 + $0x70] sm:$0xf]
        %v1070 = vld [vmem:[#allocation11 + $0x74] sm:$0xf]
        %v1071 = vld [vmem:[#allocation11 + $0x78] sm:$0xf]
        %v1072 = vld [vmem:[#allocation11 + $0x7c] sm:$0xf]
        %v1073 = vld [vmem:[#allocation11 + $0x80] sm:$0xf]
        %v1074 = vld [vmem:[#allocation11 + $0x84] sm:$0xf]
        %v1075 = vld [vmem:[#allocation11 + $0x88] sm:$0xf]
        %v1076 = vld [vmem:[#allocation11 + $0x8c] sm:$0xf]
        %v1077 = vld [vmem:[#allocation11 + $0x90] sm:$0xf]
        %v1078 = vld [vmem:[#allocation11 + $0x94] sm:$0xf]
        %v1079 = vld [vmem:[#allocation11 + $0x98] sm:$0xf]
        %v1080 = vld [vmem:[#allocation11 + $0x9c] sm:$0xf]
        %v1081 = vld [vmem:[#allocation11 + $0xa0] sm:$0xf]
        %v1082 = vld [vmem:[#allocation11 + $0xa4] sm:$0xf]
        %v1083 = vld [vmem:[#allocation11 + $0xa8] sm:$0xf]
        %v1084 = vld [vmem:[#allocation11 + $0xac] sm:$0xf]
        %v1085 = vld [vmem:[#allocation11 + $0xb0] sm:$0xf]
        %v1086 = vld [vmem:[#allocation11 + $0xb4] sm:$0xf]
        %v1087 = vld [vmem:[#allocation11 + $0xb8] sm:$0xf]
        %v1088 = vld [vmem:[#allocation11 + $0xbc] sm:$0xf]
        %v1089 = vld [vmem:[#allocation11 + $0xc0] sm:$0xf]
        %v1090 = vld [vmem:[#allocation11 + $0xc4] sm:$0xf]
        %v1091 = vld [vmem:[#allocation11 + $0xc8] sm:$0xf]
        %v1092 = vld [vmem:[#allocation11 + $0xcc] sm:$0xf]
        %v1093 = vld [vmem:[#allocation11 + $0xd0] sm:$0xf]
        %v1094 = vld [vmem:[#allocation11 + $0xd4] sm:$0xf]
        %v1095 = vld [vmem:[#allocation11 + $0xd8] sm:$0xf]
        %v1096 = vld [vmem:[#allocation11 + $0xdc] sm:$0xf]
        %v1097 = vld [vmem:[#allocation11 + $0xe0] sm:$0xf]
        %v1098 = vld [vmem:[#allocation11 + $0xe4] sm:$0xf]
        %v1099 = vld [vmem:[#allocation11 + $0xe8] sm:$0xf]
        %v1100 = vld [vmem:[#allocation11 + $0xec] sm:$0xf]
        %v1101 = vld [vmem:[#allocation11 + $0xf0] sm:$0xf]
        %v1102 = vld [vmem:[#allocation11 + $0xf4] sm:$0xf]
        %v1103 = vld [vmem:[#allocation11 + $0xf8] sm:$0xf]
        %v1104 = vld [vmem:[#allocation11 + $0xfc] sm:$0xf]
        %v1105 = vld [vmem:[%s7] sm:$0x1]
        %v1107 = vlaneseq
        %v1108 = vshrl.u32 %v1107, 7
        %v1109 = vsub.s32 0, %v1108
        %v1110 = vrot.slane %v1105, %v1109
        %v1176 = vunpack.c.l.b16 %v1041
        %v1177 = vunpack.c.l.b16 %v1042
        %v1178 = vunpack.c.l.b16 %v1043
        %v1179 = vunpack.c.l.b16 %v1044
        %v1180 = vunpack.c.l.b16 %v1045
        %v1181 = vunpack.c.l.b16 %v1046
        %v1182 = vunpack.c.l.b16 %v1047
        %v1183 = vunpack.c.l.b16 %v1048
        %v1184 = vunpack.c.l.b16 %v1049
        %v1185 = vunpack.c.l.b16 %v1050
        %v1186 = vunpack.c.l.b16 %v1051
        %v1187 = vunpack.c.l.b16 %v1052
        %v1188 = vunpack.c.l.b16 %v1053
        %v1189 = vunpack.c.l.b16 %v1054
        %v1190 = vunpack.c.l.b16 %v1055
        %v1191 = vunpack.c.l.b16 %v1056
        %v1192 = vunpack.c.l.b16 %v1057
        %v1193 = vunpack.c.l.b16 %v1058
        %v1194 = vunpack.c.l.b16 %v1059
        %v1195 = vunpack.c.l.b16 %v1060
        %v1196 = vunpack.c.l.b16 %v1061
        %v1197 = vunpack.c.l.b16 %v1062
        %v1198 = vunpack.c.l.b16 %v1063
        %v1199 = vunpack.c.l.b16 %v1064
        %v1200 = vunpack.c.l.b16 %v1065
        %v1201 = vunpack.c.l.b16 %v1066
        %v1202 = vunpack.c.l.b16 %v1067
        %v1203 = vunpack.c.l.b16 %v1068
        %v1204 = vunpack.c.l.b16 %v1069
        %v1205 = vunpack.c.l.b16 %v1070
        %v1206 = vunpack.c.l.b16 %v1071
        %v1207 = vunpack.c.l.b16 %v1072
        %v1208 = vunpack.c.l.b16 %v1073
        %v1209 = vunpack.c.l.b16 %v1074
        %v1210 = vunpack.c.l.b16 %v1075
        %v1211 = vunpack.c.l.b16 %v1076
        %v1212 = vunpack.c.l.b16 %v1077
        %v1213 = vunpack.c.l.b16 %v1078
        %v1214 = vunpack.c.l.b16 %v1079
        %v1215 = vunpack.c.l.b16 %v1080
        %v1216 = vunpack.c.l.b16 %v1081
        %v1217 = vunpack.c.l.b16 %v1082
        %v1218 = vunpack.c.l.b16 %v1083
        %v1219 = vunpack.c.l.b16 %v1084
        %v1220 = vunpack.c.l.b16 %v1085
        %v1221 = vunpack.c.l.b16 %v1086
        %v1222 = vunpack.c.l.b16 %v1087
        %v1223 = vunpack.c.l.b16 %v1088
        %v1224 = vunpack.c.l.b16 %v1089
        %v1225 = vunpack.c.l.b16 %v1090
        %v1226 = vunpack.c.l.b16 %v1091
        %v1227 = vunpack.c.l.b16 %v1092
        %v1228 = vunpack.c.l.b16 %v1093
        %v1229 = vunpack.c.l.b16 %v1094
        %v1230 = vunpack.c.l.b16 %v1095
        %v1231 = vunpack.c.l.b16 %v1096
        %v1232 = vunpack.c.l.b16 %v1097
        %v1233 = vunpack.c.l.b16 %v1098
        %v1234 = vunpack.c.l.b16 %v1099
        %v1235 = vunpack.c.l.b16 %v1100
        %v1236 = vunpack.c.l.b16 %v1101
        %v1237 = vunpack.c.l.b16 %v1102
        %v1238 = vunpack.c.l.b16 %v1103
        %v1239 = vunpack.c.l.b16 %v1104
        %v1240 = vpack.c.b16 %v1177, %v1176
        %v1241 = vpack.c.b16 %v1179, %v1178
        %v1242 = vpack.c.b16 %v1181, %v1180
        %v1243 = vpack.c.b16 %v1183, %v1182
        %v1244 = vpack.c.b16 %v1185, %v1184
        %v1245 = vpack.c.b16 %v1187, %v1186
        %v1246 = vpack.c.b16 %v1189, %v1188
        %v1247 = vpack.c.b16 %v1191, %v1190
        %v1248 = vpack.c.b16 %v1193, %v1192
        %v1249 = vpack.c.b16 %v1195, %v1194
        %v1250 = vpack.c.b16 %v1197, %v1196
        %v1251 = vpack.c.b16 %v1199, %v1198
        %v1252 = vpack.c.b16 %v1201, %v1200
        %v1253 = vpack.c.b16 %v1203, %v1202
        %v1254 = vpack.c.b16 %v1205, %v1204
        %v1255 = vpack.c.b16 %v1207, %v1206
        %v1256 = vpack.c.b16 %v1209, %v1208
        %v1257 = vpack.c.b16 %v1211, %v1210
        %v1258 = vpack.c.b16 %v1213, %v1212
        %v1259 = vpack.c.b16 %v1215, %v1214
        %v1260 = vpack.c.b16 %v1217, %v1216
        %v1261 = vpack.c.b16 %v1219, %v1218
        %v1262 = vpack.c.b16 %v1221, %v1220
        %v1263 = vpack.c.b16 %v1223, %v1222
        %v1264 = vpack.c.b16 %v1225, %v1224
        %v1265 = vpack.c.b16 %v1227, %v1226
        %v1266 = vpack.c.b16 %v1229, %v1228
        %v1267 = vpack.c.b16 %v1231, %v1230
        %v1268 = vpack.c.b16 %v1233, %v1232
        %v1269 = vpack.c.b16 %v1235, %v1234
        %v1270 = vpack.c.b16 %v1237, %v1236
        %v1271 = vpack.c.b16 %v1239, %v1238
        %1304 = vmatprep.subr.bf16.mxu0 0
        %1305 = vmatpush1.bf16.msra.mxu0 %v1240
        %1306 = vmatprep.subr.bf16.mxu0 0
        %1307 = vmatpush1.bf16.msra.mxu0 %v1241
        %1308 = vmatprep.subr.bf16.mxu0 0
        %1309 = vmatpush1.bf16.msra.mxu0 %v1242
        %1310 = vmatprep.subr.bf16.mxu0 0
        %1311 = vmatpush1.bf16.msra.mxu0 %v1243
        %1312 = vmatprep.subr.bf16.mxu0 0
        %1313 = vmatpush1.bf16.msra.mxu0 %v1244
        %1314 = vmatprep.subr.bf16.mxu0 0
        %1315 = vmatpush1.bf16.msra.mxu0 %v1245
        %1316 = vmatprep.subr.bf16.mxu0 0
        %1317 = vmatpush1.bf16.msra.mxu0 %v1246
        %1318 = vmatprep.subr.bf16.mxu0 0
        %1319 = vmatpush1.bf16.msra.mxu0 %v1247
        %1320 = vmatprep.subr.bf16.mxu0 0
        %1321 = vmatpush1.bf16.msra.mxu0 %v1248
        %1322 = vmatprep.subr.bf16.mxu0 0
        %1323 = vmatpush1.bf16.msra.mxu0 %v1249
        %1324 = vmatprep.subr.bf16.mxu0 0
        %1325 = vmatpush1.bf16.msra.mxu0 %v1250
        %1326 = vmatprep.subr.bf16.mxu0 0
        %1327 = vmatpush1.bf16.msra.mxu0 %v1251
        %1328 = vmatprep.subr.bf16.mxu0 0
        %1329 = vmatpush1.bf16.msra.mxu0 %v1252
        %1330 = vmatprep.subr.bf16.mxu0 0
        %1331 = vmatpush1.bf16.msra.mxu0 %v1253
        %1332 = vmatprep.subr.bf16.mxu0 0
        %1333 = vmatpush1.bf16.msra.mxu0 %v1254
        %1334 = vmatprep.subr.bf16.mxu0 0
        %1335 = vmatpush1.bf16.msra.mxu0 %v1255
        %1336 = vmatprep.mubr.bf16.mxu0 %v1038
        %1337 = vmatmul.mubr.bf16.gmra.mrb[0].mxu0 %v1037
        %v1338 = vpop.f32.mrb[0].mxu0
        %v1339 = vadd.f32 %v1110, %v1338
        %v1340 = vpop.f32.mrb[0].mxu0
        %v1341 = vpop.f32.mrb[0].mxu0
        %v1342 = vadd.f32 %v1110, %v1341
        %v1343 = vpop.f32.mrb[0].mxu0
        %1344 = vdwg.mxu0
        %1345 = vmatprep.subr.bf16.mxu0 0
        %1346 = vmatpush1.bf16.msra.mxu0 %v1256
        %1347 = vmatprep.subr.bf16.mxu0 0
        %1348 = vmatpush1.bf16.msra.mxu0 %v1257
        %1349 = vmatprep.subr.bf16.mxu0 0
        %1350 = vmatpush1.bf16.msra.mxu0 %v1258
        %1351 = vmatprep.subr.bf16.mxu0 0
        %1352 = vmatpush1.bf16.msra.mxu0 %v1259
        %1353 = vmatprep.subr.bf16.mxu0 0
        %1354 = vmatpush1.bf16.msra.mxu0 %v1260
        %1355 = vmatprep.subr.bf16.mxu0 0
        %1356 = vmatpush1.bf16.msra.mxu0 %v1261
        %1357 = vmatprep.subr.bf16.mxu0 0
        %1358 = vmatpush1.bf16.msra.mxu0 %v1262
        %1359 = vmatprep.subr.bf16.mxu0 0
        %1360 = vmatpush1.bf16.msra.mxu0 %v1263
        %1361 = vmatprep.subr.bf16.mxu0 0
        %1362 = vmatpush1.bf16.msra.mxu0 %v1264
        %1363 = vmatprep.subr.bf16.mxu0 0
        %1364 = vmatpush1.bf16.msra.mxu0 %v1265
        %1365 = vmatprep.subr.bf16.mxu0 0
        %1366 = vmatpush1.bf16.msra.mxu0 %v1266
        %1367 = vmatprep.subr.bf16.mxu0 0
        %1368 = vmatpush1.bf16.msra.mxu0 %v1267
        %1369 = vmatprep.subr.bf16.mxu0 0
        %1370 = vmatpush1.bf16.msra.mxu0 %v1268
        %1371 = vmatprep.subr.bf16.mxu0 0
        %1372 = vmatpush1.bf16.msra.mxu0 %v1269
        %1373 = vmatprep.subr.bf16.mxu0 0
        %1374 = vmatpush1.bf16.msra.mxu0 %v1270
        %1375 = vmatprep.subr.bf16.mxu0 0
        %1376 = vmatpush1.bf16.msra.mxu0 %v1271
        %1377 = vmatprep.mubr.bf16.mxu0 %v1040
        %1378 = vmatmul.mubr.bf16.gmra.mrb[0].mxu0 %v1039
        %v1379 = vpop.f32.mrb[0].mxu0
        %v1380 = vadd.f32 %v1339, %v1379
        %v1381 = vpop.f32.mrb[0].mxu0
        %v1382 = vpop.f32.mrb[0].mxu0
        %v1383 = vadd.f32 %v1342, %v1382
        %v1384 = vpop.f32.mrb[0].mxu0
        %1385 = vdwg.mxu0
        %v1386 = vadd.f32 %v704, %v1380
        %v1387 = vadd.f32 %v705, %v1383
        %1388 = vst [vmem:[%s394] sm:$0xff] %v1386
        %1389 = vst [vmem:[%s394 + $0x8] sm:$0xff] %v1387
        %s1390 = sand.u32 %s209, 1
        %s1391 = scalar_lea.sflag [#allocation4], %s1390
        %s1392 = sand.u32 %s209, 1
        %s1393 = smul.addr %s1392, 16
        %s1394 = scalar_lea.vmem [#allocation13], %s1393
        // Predicated region
        $region77: #{run_block4.1} parent=51 // pred_check
          %p1395 = pneg %p219
        $region78: #{run_block4.1} parent=51 // pred_check_branch
          %1397 = sbr.rel (%p1395) target = $region80
        $region79: #{run_block4.1} parent=51 // pred_region
          %s1399 = ssub.s32 256, 256
          %1400 = vsyncadd %s1391, %s1399
          %s1401 = smul.addr %s28, 2
          %s1402 = smul.addr %s1401, 128
          %s1403 = scalar_lea.hbm %s8, %s1402
          %s1404 = sshll.u32 %s1394, 4
          %s1405 = int_to_ptr.vmem [resolvable:$true] %s1404
          %1410 = dma.vmem_to_hbm [thread:$0]  %s1405, 256, %s1403, %s1391, 128, 128, 8
        $region80: #{run_block4.1} parent=51 // pred_fallthru
          _
      $region52: #{run_block4.1} parent=5 // pred_fallthru
        _
      %p1411 = scmp.le.s32.totalorder 2, %s23
      // Predicated region
      $region81: #{run_block4.1} parent=5 // pred_check
        %p1412 = pneg %p1411
      $region82: #{run_block4.1} parent=5 // pred_check_branch
        %1414 = sbr.rel (%p1412) target = $region84
      $region83: #{run_block4.1} parent=5 // pred_region
        %s1415 = ssub.s32 %s23, 2
        // Predicated region
        $region85: #{run_block4.1} parent=83 // pred_check
          %p1416 = pneg %p225
        $region86: #{run_block4.1} parent=83 // pred_check_branch
          %1418 = sbr.rel (%p1416) target = $region88
        $region87: #{run_block4.1} parent=83 // pred_region
          %s1419 = sand.u32 %s210, 1
          %s1420 = scalar_lea.sflag [#allocation4], %s1419
          %s1421 = sand.u32 %s210, 1
          %s1422 = smul.addr %s1421, 16
          %s1423 = scalar_lea.vmem [#allocation13], %s1422
          %1424 = dma.done %s1420, 256
        $region88: #{run_block4.1} parent=83 // pred_fallthru
          _
      $region84: #{run_block4.1} parent=5 // pred_fallthru
        _
    $region6: #{run_block4.1} parent=1 // loop_footer
      %s27 = sadd.s32 1, %s23
    $region7: #{run_block4.1} parent=1 // loop_footer_branch
      %22 = sbr.rel target = $region3
    $region8: #{run_block4.1} parent=1 // loop_exit
      _
    %1425 = vsyncpa [#allocation3], 1
    %s1426 = scalar_lea.sflag [#allocation3], 1
    %1427 = vsyncpa %s1426, 1
    %1428 = vsyncpa [#allocation6], 1
    %1429 = vsyncpa [#allocation9], 1
    %1430 = vsyncpa [#allocation12], 1
    %1431 = vsyncpa [#allocation4], 1
    %s1432 = scalar_lea.sflag [#allocation4], 1
    %1433 = vsyncpa %s1432, 1

</llo_original>
